<compile_context>
chip_gen: v5e
topology: v5e:2x2
jax: 0.10.0
libtpu: 0.0.40
codegen_flags: <defaults>
</compile_context>

<pallas_src>
import jax
import jax.numpy as jnp
from jax.experimental import pallas as pl
from jax.experimental.pallas import tpu as pltpu

NODE_N = 196  # fixed by GraphConvolution(node_n=196) in the module __init__

_VMEM_BUDGET_BYTES = 24 << 20   # conservative tile-size budget (all buffers counted x2)
_VMEM_LIMIT_BYTES = 32 << 20    # scoped-VMEM limit requested from Mosaic (safe on v5e/v6e/v7x)


# ---------------------------------------------------------------------------
# Chip / tiling heuristics
# ---------------------------------------------------------------------------

def _tpu_generation():
    """Best-effort TPU generation from device_kind (defaults to v6-class)."""
    try:
        kind = jax.devices()[0].device_kind.lower()
    except Exception:
        return 6
    if "v7" in kind or "tpu7" in kind:
        return 7
    for g in (6, 5, 4, 3):
        if f"v{g}" in kind:
            return g
    return 6


def _chip_tiling_params():
    gen = _tpu_generation()
    # I_bt (x) W wastes ~bt x MXU FLOPs on the first matmul: negligible on
    # v6e/v7x (918/996 TF/s), noticeable on v5e (197 TF/s) -> cap bt lower there.
    max_bt = 32 if gen >= 6 else (16 if gen == 5 else 8)
    # v7x has 2 TensorCores per chip: prefer >= 2 batch tiles so the
    # "parallel" grid axis can shard across cores.
    num_cores = 2 if gen >= 7 else 1
    return max_bt, num_cores


def _tile_vmem_bytes(bt, latent_dim, out_feats, x_itemsize, cdt_itemsize, out_itemsize):
    """Conservative per-call VMEM estimate (assumes every buffer is doubled)."""
    x_tile = NODE_N * bt * latent_dim * x_itemsize
    w_blk = (bt * latent_dim) * (bt * out_feats) * cdt_itemsize
    att = NODE_N * NODE_N * 4
    bias = bt * out_feats * 4
    out_tile = bt * out_feats * NODE_N * out_itemsize
    return 2 * (x_tile + w_blk + att + bias + out_tile)


def _choose_batch_tile(bs, latent_dim, out_feats, *, max_bt, num_cores, vmem_fits):
    """Pick (bt, bs_padded).

    A non-full-span block needs (bt*latent) % 128 == 0 on the x lane axis and
    (bt*out) % 8 == 0 on the output sublane axis.  bt == bs (full-span blocks)
    is always layout-legal but builds an I_bs (x) W weight, so it is only used
    for small batches with no tiled decomposition.
    """
    def legal(bt):
        return (bt * latent_dim) % 128 == 0 and (bt * out_feats) % 8 == 0

    legal_bts = [bt for bt in range(1, max_bt + 1) if legal(bt) and vmem_fits(bt)]

    def pick(cands, min_tiles):
        ok = [bt for bt in cands if -(-bs // bt) >= min_tiles]
        return max(ok) if ok else None

    # 1) exact divisors of bs (no padding), largest first, preferring >= num_cores tiles.
    divisors = [bt for bt in legal_bts if bs % bt == 0]
    for min_tiles in range(num_cores, 0, -1):
        bt = pick(divisors, min_tiles)
        if bt is not None:
            return bt, bs
    # 2) small batch with no tiled decomposition: one full-span block (tiny kron).
    if bs <= max_bt and vmem_fits(bs):
        return bs, bs
    # 3) ragged batch: pad up to the largest legal tile (avoids the bt == bs kron cliff).
    for min_tiles in range(num_cores, 0, -1):
        bt = pick(legal_bts, min_tiles)
        if bt is not None:
            return bt, -(-bs // bt) * bt
    # 4) last resort (awkward latent/out dims): full-span block.
    return bs, bs


# ---------------------------------------------------------------------------
# Constant-operand prep (hoisted out of the per-call path; cache per bt)
# ---------------------------------------------------------------------------

def prepare_gcn_operands(weight, att, bias, bt, compute_dtype):
    """Build the per-batch-tile constant operands once (cache across calls)."""
    latent_dim, out_feats = weight.shape
    w_blk = jnp.kron(jnp.eye(bt, dtype=weight.dtype), weight).astype(compute_dtype)
    att_t = att.T.astype(jnp.float32)  # adjacency pass stays f32 (cheap; one less rounding)
    bias_col = jnp.tile(bias, (bt,)).reshape(bt * out_feats, 1).astype(jnp.float32)
    return w_blk, att_t, bias_col


# ---------------------------------------------------------------------------
# Kernel
# ---------------------------------------------------------------------------

def _gcn_kernel(x_ref, wblk_ref, attT_ref, b_ref, o_ref):
    # x_ref:    (NODE_N, bt*latent)   node-major input, batch folded into lanes
    # wblk_ref: (bt*latent, bt*out)   block-diagonal weight I_bt (x) W (compute dtype)
    # attT_ref: (NODE_N, NODE_N)      adjacency, pre-transposed, f32
    # b_ref:    (bt*out, 1)           bias tiled per batch element (column), f32
    # o_ref:    (bt*out, NODE_N)      transposed output tile
    cdt = wblk_ref.dtype
    x = x_ref[...].astype(cdt)
    # support[n, (b,o)] = sum_d x[n, (b,d)] * W_blk[(b,d), (b,o)] -- one MXU push per tile.
    support = jnp.dot(x, wblk_ref[...], preferred_element_type=jnp.float32)
    # out^T[(b,o), n] = sum_m support[m, (b,o)] * att[n, m]  (both operands contracted
    # on their sublane axis).  `support` stays f32 so this pass adds no extra rounding.
    # TODO(synk): confirm via pl.lower_as_mlir that this TN contraction lowers to an
    # XLU transpose + matmul rather than a generic vreg relayout.
    out_t = jax.lax.dot_general(
        support, attT_ref[...],
        dimension_numbers=(((0,), (0,)), ((), ())),
        preferred_element_type=jnp.float32)
    o_ref[...] = (out_t + b_ref[...]).astype(o_ref.dtype)


def gcn_pallas(x_nbd, w_blk, att_t, bias_col, *, bt, bs_padded, out_feats,
               out_dtype=jnp.float32):
    """GraphConvolution forward, node-major, batch folded into lanes.

    x_nbd:    [NODE_N, bs, latent_dim]           (module-native layout, no transpose)
    w_blk:    [bt*latent_dim, bt*out_feats]      block-diagonal I_bt (x) W
    att_t:    [NODE_N, NODE_N]                   att transposed, f32
    bias_col: [bt*out_feats, 1]                  bias tiled per batch element
    returns   [bs * out_feats, NODE_N]           transposed result (caller reshapes for free)
    """
    node_n, bs, latent_dim = x_nbd.shape
    assert node_n == NODE_N
    assert bs_padded >= bs and bs_padded % bt == 0

    if bs_padded != bs:
        # Ragged batch: zero-pad instead of building an I_bs (x) W kron cliff.
        x_nbd = jnp.pad(x_nbd, ((0, 0), (0, bs_padded - bs), (0, 0)))
    n_tiles = bs_padded // bt

    # Free reshape: fold batch into the lane axis (contiguous collapse, no copy).
    x2d = x_nbd.reshape(node_n, bs_padded * latent_dim)

    flops = int(2 * node_n * n_tiles * (bt * latent_dim) * (bt * out_feats)
                + 2 * node_n * node_n * bs_padded * out_feats)
    bytes_accessed = int(x2d.size * x2d.dtype.itemsize
                         + w_blk.size * w_blk.dtype.itemsize
                         + att_t.size * att_t.dtype.itemsize
                         + bias_col.size * bias_col.dtype.itemsize
                         + bs_padded * out_feats * node_n * jnp.dtype(out_dtype).itemsize)

    def run(single_buffer_consts):
        def const_spec(shape):
            if single_buffer_consts:
                # Constant-index operands are fetched once; a second pipeline
                # buffer only wastes VMEM (w_blk grows as bt^2).
                return pl.BlockSpec(shape, lambda t: (0, 0),
                                    pipeline_mode=pl.Buffered(1))
            return pl.BlockSpec(shape, lambda t: (0, 0))

        return pl.pallas_call(
            _gcn_kernel,
            out_shape=jax.ShapeDtypeStruct((bs_padded * out_feats, node_n), out_dtype),
            grid_spec=pltpu.PrefetchScalarGridSpec(
                num_scalar_prefetch=0,
                grid=(n_tiles,),
                in_specs=[
                    pl.BlockSpec((node_n, bt * latent_dim), lambda t: (0, t)),
                    const_spec((bt * latent_dim, bt * out_feats)),
                    const_spec((node_n, node_n)),
                    const_spec((bt * out_feats, 1)),
                ],
                out_specs=pl.BlockSpec((bt * out_feats, node_n), lambda t: (t, 0)),
            ),
            compiler_params=pltpu.CompilerParams(
                # Batch tiles are independent: megacore-shards on v7x when n_tiles >= 2.
                dimension_semantics=("parallel",),
                vmem_limit_bytes=_VMEM_LIMIT_BYTES,
            ),
            cost_estimate=pl.CostEstimate(
                flops=flops, transcendentals=0, bytes_accessed=bytes_accessed),
        )(x2d, w_blk, att_t, bias_col)

    try:
        out_t = run(single_buffer_consts=True)
    except Exception:
        # pl.Buffered(1) rejected on this jax build -> default double buffering.
        out_t = run(single_buffer_consts=False)

    if bs_padded != bs:
        out_t = out_t[: bs * out_feats]
    return out_t


# ---------------------------------------------------------------------------
# Module port
# ---------------------------------------------------------------------------

class OutputProcessWGCN:
    """JAX port of OutputProcess_wGCN with deterministic synthetic weights."""

    def __init__(self, data_rep, input_feats, latent_dim, njoints, nfeats, lv,
                 key=jax.random.PRNGKey(0), compute_dtype=jnp.bfloat16):
        if data_rep == 'rot_vel':
            raise ValueError
        self.data_rep = data_rep
        self.input_feats = input_feats
        self.latent_dim = latent_dim
        self.njoints = njoints
        self.nfeats = nfeats
        self.lv = lv
        self.compute_dtype = compute_dtype
        self.out_feats = input_feats * 2 if lv else input_feats

        k_w, k_a, k_b = jax.random.split(key, 3)
        stdv = 1.0 / (self.out_feats ** 0.5)
        # GraphConvolution params: weight [in,out], att [node_n,node_n], bias [out]
        self.weight = jax.random.uniform(
            k_w, (latent_dim, self.out_feats), jnp.float32, -stdv, stdv)
        self.att = jax.random.uniform(
            k_a, (NODE_N, NODE_N), jnp.float32, -stdv, stdv)
        self.bias = jax.random.uniform(
            k_b, (self.out_feats,), jnp.float32, -stdv, stdv)

        self._max_bt, self._num_cores = _chip_tiling_params()
        self._tile_cache = {}      # bs -> (bt, bs_padded)
        self._operand_cache = {}   # bt -> (w_blk, att_t, bias_col)

    def _tiling_for(self, bs):
        if bs not in self._tile_cache:
            cdt_isz = jnp.dtype(self.compute_dtype).itemsize

            def vmem_fits(bt):
                return _tile_vmem_bytes(bt, self.latent_dim, self.out_feats,
                                        4, cdt_isz, 4) <= _VMEM_BUDGET_BYTES

            self._tile_cache[bs] = _choose_batch_tile(
                bs, self.latent_dim, self.out_feats,
                max_bt=self._max_bt, num_cores=self._num_cores,
                vmem_fits=vmem_fits)
        return self._tile_cache[bs]

    def _operands_for(self, bt):
        # Hoisted constant prep: built once per batch tile, reused every forward.
        if bt not in self._operand_cache:
            self._operand_cache[bt] = prepare_gcn_operands(
                self.weight, self.att, self.bias, bt, self.compute_dtype)
        return self._operand_cache[bt]

    def __call__(self, output):
        nframes, bs, d = output.shape
        assert nframes == NODE_N, "GraphConvolution(node_n=196) requires nframes == 196"
        if self.data_rep not in ['rot6d', 'xyz', 'hml_vec']:
            raise ValueError
        bt, bs_padded = self._tiling_for(bs)
        w_blk, att_t, bias_col = self._operands_for(bt)
        # Kernel returns (bs*out_feats, 196); everything below is a free reshape
        # (the module's permutes fold away with the transposed kernel output).
        y_t = gcn_pallas(output, w_blk, att_t, bias_col,
                         bt=bt, bs_padded=bs_padded, out_feats=self.out_feats,
                         out_dtype=jnp.float32)
        return y_t.reshape(bs, self.out_feats, self.nfeats, nframes)

    def reference(self, output):
        """Pure-JAX f32 (HIGHEST precision) reference of the original forward."""
        nframes, bs, d = output.shape
        hi = jax.lax.Precision.HIGHEST
        x = jnp.transpose(output, (1, 0, 2))
        support = jnp.einsum('bnd,do->bno', x, self.weight, precision=hi)
        x = jnp.einsum('nm,bmo->bno', self.att, support, precision=hi) + self.bias
        x = jnp.transpose(x, (1, 0, 2))
        x = x.reshape(nframes, bs, self.out_feats, self.nfeats)
        return jnp.transpose(x, (1, 2, 3, 0))


if __name__ == "__main__":
    # Small shapes consistent with the module:
    #   nframes pinned to 196 by node_n=196; nfeats=1 (hml_vec style).
    nframes, bs = NODE_N, 8
    latent_dim = 32
    njoints, nfeats = 16, 1
    input_feats = njoints * nfeats
    lv = False

    key = jax.random.PRNGKey(0)
    k_in, k_par = jax.random.split(key)
    x = jax.random.normal(k_in, (nframes, bs, latent_dim), jnp.float32)

    mod = OutputProcessWGCN('hml_vec', input_feats, latent_dim, njoints,
                            nfeats, lv, key=k_par)

    out = jax.block_until_ready(mod(x))
    ref = mod.reference(x)

    assert out.shape == (bs, input_feats, nfeats, nframes), out.shape
    # bf16 first-matmul inputs (f32 accumulation) + f32 adjacency pass vs f32 reference.
    max_err = float(jnp.max(jnp.abs(out - ref)))
    assert jnp.allclose(out, ref, atol=3e-2, rtol=3e-2), f"mismatch, max err {max_err}"

    print("KERNEL_OK")
</pallas_src>

<mosaic_0001>
module attributes {stable_mosaic.version = 11 : i64} {
  func.func @_gcn_kernel(%arg0: i32, %arg1: memref<196x256xf32, #tpu.memory_space<vmem>>, %arg2: memref<256x128xbf16, #tpu.memory_space<vmem>>, %arg3: memref<196x196xf32, #tpu.memory_space<vmem>>, %arg4: memref<128x1xf32, #tpu.memory_space<vmem>>, %arg5: memref<128x196xf32, #tpu.memory_space<vmem>>) attributes {dimension_semantics = [#tpu.dimension_semantics<parallel>], iteration_bounds = array<i64: 1>, scalar_prefetch = 0 : i64, scratch_operands = 0 : i64, tpu.core_type = #tpu.core_type<tc>, window_params = [{transform_indices = @transform_0, window_bounds = array<i64: 196, 256>}, {pipeline_mode = #tpu.pipeline_mode<synchronous>, transform_indices = @transform_1, window_bounds = array<i64: 256, 128>}, {pipeline_mode = #tpu.pipeline_mode<synchronous>, transform_indices = @transform_2, window_bounds = array<i64: 196, 196>}, {pipeline_mode = #tpu.pipeline_mode<synchronous>, transform_indices = @transform_3, window_bounds = array<i64: 128, 1>}, {transform_indices = @transform_4, window_bounds = array<i64: 128, 196>}]} {
    %c0 = arith.constant 0 : index
    %c0_0 = arith.constant 0 : index
    %0 = vector.load %arg1[%c0, %c0_0] : memref<196x256xf32, #tpu.memory_space<vmem>>, vector<196x256xf32>
    %1 = arith.truncf %0 : vector<196x256xf32> to vector<196x256xbf16>
    %c0_1 = arith.constant 0 : index
    %c0_2 = arith.constant 0 : index
    %2 = vector.load %arg2[%c0_1, %c0_2] : memref<256x128xbf16, #tpu.memory_space<vmem>>, vector<256x128xbf16>
    %cst = arith.constant dense<0.000000e+00> : vector<196x128xf32>
    %3 = tpu.matmul %1, %2, %cst {dimension_numbers = #tpu.dot_dimension_numbers<[1], [0], [0], [1], [0, 0, 1, 1], [], []>} : vector<196x256xbf16>, vector<256x128xbf16>, vector<196x128xf32> -> vector<196x128xf32>
    %c0_3 = arith.constant 0 : index
    %c0_4 = arith.constant 0 : index
    %4 = vector.load %arg3[%c0_3, %c0_4] : memref<196x196xf32, #tpu.memory_space<vmem>>, vector<196x196xf32>
    %cst_5 = arith.constant dense<0.000000e+00> : vector<128x196xf32>
    %5 = tpu.matmul %3, %4, %cst_5 {dimension_numbers = #tpu.dot_dimension_numbers<[0], [0], [1], [1], [0, 1, 1, 1], [], []>} : vector<196x128xf32>, vector<196x196xf32>, vector<128x196xf32> -> vector<128x196xf32>
    %c0_6 = arith.constant 0 : index
    %c0_7 = arith.constant 0 : index
    %6 = vector.load %arg4[%c0_6, %c0_7] : memref<128x1xf32, #tpu.memory_space<vmem>>, vector<128x1xf32>
    %7 = vector.broadcast %6 : vector<128x1xf32> to vector<128x196xf32>
    %8 = arith.addf %5, %7 : vector<128x196xf32>
    %c0_8 = arith.constant 0 : index
    %c0_9 = arith.constant 0 : index
    %9 = vector.load %arg5[%c0_8, %c0_9] : memref<128x196xf32, #tpu.memory_space<vmem>>, vector<128x196xf32>
    tpu.vector_store %arg5[%c0_8, %c0_9], %8 {strides = array<i32>} : memref<128x196xf32, #tpu.memory_space<vmem>>, vector<128x196xf32>,
    return
  }
  func.func @transform_0(%arg0: i32) -> (i32, i32) {
    %c0_i32 = arith.constant 0 : i32
    %c0_i32_0 = arith.constant 0 : i32
    return %c0_i32, %arg0 : i32, i32
  }
  func.func @transform_1(%arg0: i32) -> (i32, i32) {
    %c0_i32 = arith.constant 0 : i32
    %c0_i32_0 = arith.constant 0 : i32
    %c0_i32_1 = arith.constant 0 : i32
    return %c0_i32, %c0_i32_0 : i32, i32
  }
  func.func @transform_2(%arg0: i32) -> (i32, i32) {
    %c0_i32 = arith.constant 0 : i32
    %c0_i32_0 = arith.constant 0 : i32
    %c0_i32_1 = arith.constant 0 : i32
    return %c0_i32, %c0_i32_0 : i32, i32
  }
  func.func @transform_3(%arg0: i32) -> (i32, i32) {
    %c0_i32 = arith.constant 0 : i32
    %c0_i32_0 = arith.constant 0 : i32
    %c0_i32_1 = arith.constant 0 : i32
    return %c0_i32, %c0_i32_0 : i32, i32
  }
  func.func @transform_4(%arg0: i32) -> (i32, i32) {
    %c0_i32 = arith.constant 0 : i32
    %c0_i32_0 = arith.constant 0 : i32
    return %arg0, %c0_i32 : i32, i32
  }
}

module attributes {stable_mosaic.version = 11 : i64} {
  func.func @_gcn_kernel(%arg0: i32, %arg1: memref<196x256xf32, #tpu.memory_space<vmem>>, %arg2: memref<256x128xbf16, #tpu.memory_space<vmem>>, %arg3: memref<196x196xf32, #tpu.memory_space<vmem>>, %arg4: memref<128x1xf32, #tpu.memory_space<vmem>>, %arg5: memref<128x196xf32, #tpu.memory_space<vmem>>) attributes {dimension_semantics = [#tpu.dimension_semantics<parallel>], iteration_bounds = array<i64: 1>, scalar_prefetch = 0 : i64, scratch_operands = 0 : i64, tpu.core_type = #tpu.core_type<tc>, window_params = [{transform_indices = @transform_0, window_bounds = array<i64: 196, 256>}, {pipeline_mode = #tpu.pipeline_mode<synchronous>, transform_indices = @transform_1, window_bounds = array<i64: 256, 128>}, {pipeline_mode = #tpu.pipeline_mode<synchronous>, transform_indices = @transform_2, window_bounds = array<i64: 196, 196>}, {pipeline_mode = #tpu.pipeline_mode<synchronous>, transform_indices = @transform_3, window_bounds = array<i64: 128, 1>}, {transform_indices = @transform_4, window_bounds = array<i64: 128, 196>}]} {
    %c0 = arith.constant 0 : index
    %c0_0 = arith.constant 0 : index
    %0 = vector.load %arg1[%c0, %c0_0] : memref<196x256xf32, #tpu.memory_space<vmem>>, vector<196x256xf32>
    %1 = arith.truncf %0 : vector<196x256xf32> to vector<196x256xbf16>
    %c0_1 = arith.constant 0 : index
    %c0_2 = arith.constant 0 : index
    %2 = vector.load %arg2[%c0_1, %c0_2] : memref<256x128xbf16, #tpu.memory_space<vmem>>, vector<256x128xbf16>
    %cst = arith.constant dense<0.000000e+00> : vector<196x128xf32>
    %3 = tpu.matmul %1, %2, %cst {dimension_numbers = #tpu.dot_dimension_numbers<[1], [0], [0], [1], [0, 0, 1, 1], [], []>} : vector<196x256xbf16>, vector<256x128xbf16>, vector<196x128xf32> -> vector<196x128xf32>
    %c0_3 = arith.constant 0 : index
    %c0_4 = arith.constant 0 : index
    %4 = vector.load %arg3[%c0_3, %c0_4] : memref<196x196xf32, #tpu.memory_space<vmem>>, vector<196x196xf32>
    %cst_5 = arith.constant dense<0.000000e+00> : vector<128x196xf32>
    %5 = tpu.matmul %3, %4, %cst_5 {dimension_numbers = #tpu.dot_dimension_numbers<[0], [0], [1], [1], [0, 1, 1, 1], [], []>} : vector<196x128xf32>, vector<196x196xf32>, vector<128x196xf32> -> vector<128x196xf32>
    %c0_6 = arith.constant 0 : index
    %c0_7 = arith.constant 0 : index
    %6 = vector.load %arg4[%c0_6, %c0_7] : memref<128x1xf32, #tpu.memory_space<vmem>>, vector<128x1xf32>
    %7 = vector.broadcast %6 : vector<128x1xf32> to vector<128x196xf32>
    %8 = arith.addf %5, %7 : vector<128x196xf32>
    %c0_8 = arith.constant 0 : index
    %c0_9 = arith.constant 0 : index
    %9 = vector.load %arg5[%c0_8, %c0_9] : memref<128x196xf32, #tpu.memory_space<vmem>>, vector<128x196xf32>
    tpu.vector_store %arg5[%c0_8, %c0_9], %8 {strides = array<i32>} : memref<128x196xf32, #tpu.memory_space<vmem>>, vector<128x196xf32>,
    return
  }
  func.func @transform_0(%arg0: i32) -> (i32, i32) {
    %c0_i32 = arith.constant 0 : i32
    %c0_i32_0 = arith.constant 0 : i32
    return %c0_i32, %arg0 : i32, i32
  }
  func.func @transform_1(%arg0: i32) -> (i32, i32) {
    %c0_i32 = arith.constant 0 : i32
    %c0_i32_0 = arith.constant 0 : i32
    %c0_i32_1 = arith.constant 0 : i32
    return %c0_i32, %c0_i32_0 : i32, i32
  }
  func.func @transform_2(%arg0: i32) -> (i32, i32) {
    %c0_i32 = arith.constant 0 : i32
    %c0_i32_0 = arith.constant 0 : i32
    %c0_i32_1 = arith.constant 0 : i32
    return %c0_i32, %c0_i32_0 : i32, i32
  }
  func.func @transform_3(%arg0: i32) -> (i32, i32) {
    %c0_i32 = arith.constant 0 : i32
    %c0_i32_0 = arith.constant 0 : i32
    %c0_i32_1 = arith.constant 0 : i32
    return %c0_i32, %c0_i32_0 : i32, i32
  }
  func.func @transform_4(%arg0: i32) -> (i32, i32) {
    %c0_i32 = arith.constant 0 : i32
    %c0_i32_0 = arith.constant 0 : i32
    return %arg0, %c0_i32 : i32, i32
  }
}

</mosaic_0001>

<llo_original>
// kernel: tpu_custom_call.1
$region0: #{tpu_custom_call.1}
  #allocation0 [shape = 'u32[]', space=smem, size = 0x4, offset = 0x4, fixed_abs, tag = 'smem constant byte address 0x4 - core index']
  #allocation1 [shape = 'u32[72,128]{1,0:T(1,128)}', space=vmem, size = 0x9000, scoped, tag = 'internal scratch']
  %s0 = inlined_call_operand.hbm [shape: f32[196,256], index: 0, kind: input, shape index: {}]
  %s1 = inlined_call_operand.vmem [shape: bf16[256,128], index: 1, kind: input, shape index: {}]
  %s2 = inlined_call_operand.hbm [shape: f32[196,196], index: 2, kind: input, shape index: {}]
  %s3 = inlined_call_operand.vmem [shape: f32[128,1], index: 3, kind: input, shape index: {}]
  %s4 = inlined_call_operand.vmem [shape: f32[128,196], index: 4, kind: output, shape index: {}]
  %s5 = sld [smem:[#allocation0]]
  $region34: #{tpu_custom_call.1} parent=0
    _
  %s7 = ssub.s32 1, %s5
  %s8 = scalar_select 0, %s7, %s5
  $region1: #{tpu_custom_call.1} parent=0
    #allocation2 [shape = 'u8[204800]{0}', space=vmem, size = 0x32000, scoped, tag = 'input window, operand 0, single buffered']
    #allocation3 [shape = 's32[1]{0}', space=sflag, size = 0x4, scoped, tag = 'scoped memory for tpu_custom_call.1']
    #allocation4 [shape = 'u8[204800]{0}', space=vmem, size = 0x32000, scoped, tag = 'input window, operand 2, single buffered']
    #allocation5 [shape = 's32[1]{0}', space=sflag, size = 0x4, scoped, tag = 'scoped memory for tpu_custom_call.1']
    %9 = vsyncpa [#allocation3], 0
    %10 = vsyncpa [#allocation5], 0
    // Predicated region
    $region2: #{tpu_custom_call.1} parent=1 // pred_check
      _
    $region3: #{tpu_custom_call.1} parent=1 // pred_check_branch
      %12 = sbr.rel (0) target = $region5
    $region4: #{tpu_custom_call.1} parent=1 // pred_region
      %14 = vsyncadd [#allocation3], 0
      %s15 = sshll.u32 %s0, 4
      %s16 = int_to_ptr.hbm [resolvable:$true] %s15
      %s17 = sshll.u32 [#allocation2], 4
      %s18 = int_to_ptr.vmem [resolvable:$true] %s17
      %23 = dma.hbm_to_vmem [thread:$0]  %s16, 6400, %s18, [#allocation3], 256, 256, 16
    $region5: #{tpu_custom_call.1} parent=1 // pred_fallthru
      _
    // Predicated region
    $region6: #{tpu_custom_call.1} parent=1 // pred_check
      _
    $region7: #{tpu_custom_call.1} parent=1 // pred_check_branch
      %25 = sbr.rel (0) target = $region9
    $region8: #{tpu_custom_call.1} parent=1 // pred_region
      _
    $region9: #{tpu_custom_call.1} parent=1 // pred_fallthru
      _
    // Predicated region
    $region10: #{tpu_custom_call.1} parent=1 // pred_check
      _
    $region11: #{tpu_custom_call.1} parent=1 // pred_check_branch
      %27 = sbr.rel (0) target = $region13
    $region12: #{tpu_custom_call.1} parent=1 // pred_region
      %29 = vsyncadd [#allocation5], 0
      %s30 = sshll.u32 %s2, 4
      %s31 = int_to_ptr.hbm [resolvable:$true] %s30
      %s32 = sshll.u32 [#allocation4], 4
      %s33 = int_to_ptr.vmem [resolvable:$true] %s32
      %38 = dma.hbm_to_vmem [thread:$0]  %s31, 6400, %s33, [#allocation5], 256, 256, 16
    $region13: #{tpu_custom_call.1} parent=1 // pred_fallthru
      _
    // Predicated region
    $region14: #{tpu_custom_call.1} parent=1 // pred_check
      _
    $region15: #{tpu_custom_call.1} parent=1 // pred_check_branch
      %40 = sbr.rel (0) target = $region17
    $region16: #{tpu_custom_call.1} parent=1 // pred_region
      _
    $region17: #{tpu_custom_call.1} parent=1 // pred_fallthru
      _
    // Predicated region
    $region18: #{tpu_custom_call.1} parent=1 // pred_check
      _
    $region19: #{tpu_custom_call.1} parent=1 // pred_check_branch
      %42 = sbr.rel (0) target = $region21
    $region20: #{tpu_custom_call.1} parent=1 // pred_region
      %44 = dma.done [#allocation3], 6400
    $region21: #{tpu_custom_call.1} parent=1 // pred_fallthru
      _
    // Predicated region
    $region22: #{tpu_custom_call.1} parent=1 // pred_check
      _
    $region23: #{tpu_custom_call.1} parent=1 // pred_check_branch
      %46 = sbr.rel (0) target = $region25
    $region24: #{tpu_custom_call.1} parent=1 // pred_region
      %48 = dma.done [#allocation5], 6400
    $region25: #{tpu_custom_call.1} parent=1 // pred_fallthru
      _
    %v49 = vld [vmem:[#allocation2] sm:$0xff]
    %v50 = vld [vmem:[#allocation2 + $0x8] sm:$0xff]
    %v51 = vld [vmem:[#allocation2 + $0x10] sm:$0xff]
    %v52 = vld [vmem:[#allocation2 + $0x18] sm:$0xff]
    %v53 = vld [vmem:[#allocation2 + $0x20] sm:$0xff]
    %v54 = vld [vmem:[#allocation2 + $0x28] sm:$0xff]
    %v55 = vld [vmem:[#allocation2 + $0x30] sm:$0xff]
    %v56 = vld [vmem:[#allocation2 + $0x38] sm:$0xff]
    %v57 = vld [vmem:[#allocation2 + $0x40] sm:$0xff]
    %v58 = vld [vmem:[#allocation2 + $0x48] sm:$0xff]
    %v59 = vld [vmem:[#allocation2 + $0x50] sm:$0xff]
    %v60 = vld [vmem:[#allocation2 + $0x58] sm:$0xff]
    %v61 = vld [vmem:[#allocation2 + $0x60] sm:$0xff]
    %v62 = vld [vmem:[#allocation2 + $0x68] sm:$0xff]
    %v63 = vld [vmem:[#allocation2 + $0x70] sm:$0xff]
    %v64 = vld [vmem:[#allocation2 + $0x78] sm:$0xff]
    %v65 = vld [vmem:[#allocation2 + $0x80] sm:$0xff]
    %v66 = vld [vmem:[#allocation2 + $0x88] sm:$0xff]
    %v67 = vld [vmem:[#allocation2 + $0x90] sm:$0xff]
    %v68 = vld [vmem:[#allocation2 + $0x98] sm:$0xff]
    %v69 = vld [vmem:[#allocation2 + $0xa0] sm:$0xff]
    %v70 = vld [vmem:[#allocation2 + $0xa8] sm:$0xff]
    %v71 = vld [vmem:[#allocation2 + $0xb0] sm:$0xff]
    %v72 = vld [vmem:[#allocation2 + $0xb8] sm:$0xff]
    %v73 = vld [vmem:[#allocation2 + $0xc0] sm:$0xff]
    %v74 = vld [vmem:[#allocation2 + $0xc8] sm:$0xff]
    %v75 = vld [vmem:[#allocation2 + $0xd0] sm:$0xff]
    %v76 = vld [vmem:[#allocation2 + $0xd8] sm:$0xff]
    %v77 = vld [vmem:[#allocation2 + $0xe0] sm:$0xff]
    %v78 = vld [vmem:[#allocation2 + $0xe8] sm:$0xff]
    %v79 = vld [vmem:[#allocation2 + $0xf0] sm:$0xff]
    %v80 = vld [vmem:[#allocation2 + $0xf8] sm:$0xff]
    %v81 = vld [vmem:[#allocation2 + $0x100] sm:$0xff]
    %v82 = vld [vmem:[#allocation2 + $0x108] sm:$0xff]
    %v83 = vld [vmem:[#allocation2 + $0x110] sm:$0xff]
    %v84 = vld [vmem:[#allocation2 + $0x118] sm:$0xff]
    %v85 = vld [vmem:[#allocation2 + $0x120] sm:$0xff]
    %v86 = vld [vmem:[#allocation2 + $0x128] sm:$0xff]
    %v87 = vld [vmem:[#allocation2 + $0x130] sm:$0xff]
    %v88 = vld [vmem:[#allocation2 + $0x138] sm:$0xff]
    %v89 = vld [vmem:[#allocation2 + $0x140] sm:$0xff]
    %v90 = vld [vmem:[#allocation2 + $0x148] sm:$0xff]
    %v91 = vld [vmem:[#allocation2 + $0x150] sm:$0xff]
    %v92 = vld [vmem:[#allocation2 + $0x158] sm:$0xff]
    %v93 = vld [vmem:[#allocation2 + $0x160] sm:$0xff]
    %v94 = vld [vmem:[#allocation2 + $0x168] sm:$0xff]
    %v95 = vld [vmem:[#allocation2 + $0x170] sm:$0xff]
    %v96 = vld [vmem:[#allocation2 + $0x178] sm:$0xff]
    %v97 = vld [vmem:[#allocation2 + $0x180] sm:$0xf]
    %v98 = vld [vmem:[#allocation2 + $0x188] sm:$0xf]
    %v99 = vpack.c.bf16 %v51, %v49
    %v100 = vpack.c.bf16 %v52, %v50
    %v101 = vpack.c.bf16 %v55, %v53
    %v102 = vpack.c.bf16 %v56, %v54
    %v103 = vpack.c.bf16 %v59, %v57
    %v104 = vpack.c.bf16 %v60, %v58
    %v105 = vpack.c.bf16 %v63, %v61
    %v106 = vpack.c.bf16 %v64, %v62
    %v107 = vpack.c.bf16 %v67, %v65
    %v108 = vpack.c.bf16 %v68, %v66
    %v109 = vpack.c.bf16 %v71, %v69
    %v110 = vpack.c.bf16 %v72, %v70
    %v111 = vpack.c.bf16 %v75, %v73
    %v112 = vpack.c.bf16 %v76, %v74
    %v113 = vpack.c.bf16 %v79, %v77
    %v114 = vpack.c.bf16 %v80, %v78
    %v115 = vpack.c.bf16 %v83, %v81
    %v116 = vpack.c.bf16 %v84, %v82
    %v117 = vpack.c.bf16 %v87, %v85
    %v118 = vpack.c.bf16 %v88, %v86
    %v119 = vpack.c.bf16 %v91, %v89
    %v120 = vpack.c.bf16 %v92, %v90
    %v121 = vpack.c.bf16 %v95, %v93
    %v122 = vpack.c.bf16 %v96, %v94
    %v123 = vpack.c.bf16 %v97, %v97
    %v124 = vpack.c.bf16 %v98, %v98
    %v125 = vld [vmem:[%s1] sm:$0xf]
    %v126 = vld [vmem:[%s1 + $0x4] sm:$0xf]
    %v127 = vld [vmem:[%s1 + $0x8] sm:$0xf]
    %v128 = vld [vmem:[%s1 + $0xc] sm:$0xf]
    %v129 = vld [vmem:[%s1 + $0x10] sm:$0xf]
    %v130 = vld [vmem:[%s1 + $0x14] sm:$0xf]
    %v131 = vld [vmem:[%s1 + $0x18] sm:$0xf]
    %v132 = vld [vmem:[%s1 + $0x1c] sm:$0xf]
    %v133 = vld [vmem:[%s1 + $0x20] sm:$0xf]
    %v134 = vld [vmem:[%s1 + $0x24] sm:$0xf]
    %v135 = vld [vmem:[%s1 + $0x28] sm:$0xf]
    %v136 = vld [vmem:[%s1 + $0x2c] sm:$0xf]
    %v137 = vld [vmem:[%s1 + $0x30] sm:$0xf]
    %v138 = vld [vmem:[%s1 + $0x34] sm:$0xf]
    %v139 = vld [vmem:[%s1 + $0x38] sm:$0xf]
    %v140 = vld [vmem:[%s1 + $0x3c] sm:$0xf]
    %v141 = vld [vmem:[%s1 + $0x40] sm:$0xf]
    %v142 = vld [vmem:[%s1 + $0x44] sm:$0xf]
    %v143 = vld [vmem:[%s1 + $0x48] sm:$0xf]
    %v144 = vld [vmem:[%s1 + $0x4c] sm:$0xf]
    %v145 = vld [vmem:[%s1 + $0x50] sm:$0xf]
    %v146 = vld [vmem:[%s1 + $0x54] sm:$0xf]
    %v147 = vld [vmem:[%s1 + $0x58] sm:$0xf]
    %v148 = vld [vmem:[%s1 + $0x5c] sm:$0xf]
    %v149 = vld [vmem:[%s1 + $0x60] sm:$0xf]
    %v150 = vld [vmem:[%s1 + $0x64] sm:$0xf]
    %v151 = vld [vmem:[%s1 + $0x68] sm:$0xf]
    %v152 = vld [vmem:[%s1 + $0x6c] sm:$0xf]
    %v153 = vld [vmem:[%s1 + $0x70] sm:$0xf]
    %v154 = vld [vmem:[%s1 + $0x74] sm:$0xf]
    %v155 = vld [vmem:[%s1 + $0x78] sm:$0xf]
    %v156 = vld [vmem:[%s1 + $0x7c] sm:$0xf]
    %v189 = vunpack.c.l.b16 %v125
    %v190 = vunpack.c.l.b16 %v126
    %v191 = vunpack.c.l.b16 %v127
    %v192 = vunpack.c.l.b16 %v128
    %v193 = vunpack.c.l.b16 %v129
    %v194 = vunpack.c.l.b16 %v130
    %v195 = vunpack.c.l.b16 %v131
    %v196 = vunpack.c.l.b16 %v132
    %v197 = vunpack.c.l.b16 %v133
    %v198 = vunpack.c.l.b16 %v134
    %v199 = vunpack.c.l.b16 %v135
    %v200 = vunpack.c.l.b16 %v136
    %v201 = vunpack.c.l.b16 %v137
    %v202 = vunpack.c.l.b16 %v138
    %v203 = vunpack.c.l.b16 %v139
    %v204 = vunpack.c.l.b16 %v140
    %v205 = vunpack.c.l.b16 %v141
    %v206 = vunpack.c.l.b16 %v142
    %v207 = vunpack.c.l.b16 %v143
    %v208 = vunpack.c.l.b16 %v144
    %v209 = vunpack.c.l.b16 %v145
    %v210 = vunpack.c.l.b16 %v146
    %v211 = vunpack.c.l.b16 %v147
    %v212 = vunpack.c.l.b16 %v148
    %v213 = vunpack.c.l.b16 %v149
    %v214 = vunpack.c.l.b16 %v150
    %v215 = vunpack.c.l.b16 %v151
    %v216 = vunpack.c.l.b16 %v152
    %v217 = vunpack.c.l.b16 %v153
    %v218 = vunpack.c.l.b16 %v154
    %v219 = vunpack.c.l.b16 %v155
    %v220 = vunpack.c.l.b16 %v156
    %v221 = vpack.c.b16 %v190, %v189
    %v222 = vpack.c.b16 %v192, %v191
    %v223 = vpack.c.b16 %v194, %v193
    %v224 = vpack.c.b16 %v196, %v195
    %v225 = vpack.c.b16 %v198, %v197
    %v226 = vpack.c.b16 %v200, %v199
    %v227 = vpack.c.b16 %v202, %v201
    %v228 = vpack.c.b16 %v204, %v203
    %v229 = vpack.c.b16 %v206, %v205
    %v230 = vpack.c.b16 %v208, %v207
    %v231 = vpack.c.b16 %v210, %v209
    %v232 = vpack.c.b16 %v212, %v211
    %v233 = vpack.c.b16 %v214, %v213
    %v234 = vpack.c.b16 %v216, %v215
    %v235 = vpack.c.b16 %v218, %v217
    %v236 = vpack.c.b16 %v220, %v219
    %253 = vmatpush.bf16.msra.mxu0 %v228
    %254 = vmatpush.bf16.msra.mxu0 %v227
    %255 = vmatpush.bf16.msra.mxu0 %v226
    %256 = vmatpush.bf16.msra.mxu0 %v225
    %257 = vmatpush.bf16.msra.mxu0 %v224
    %258 = vmatpush.bf16.msra.mxu0 %v223
    %259 = vmatpush.bf16.msra.mxu0 %v222
    %260 = vmatpush.bf16.msra.mxu0 %v221
    %261 = vmatmul.bf16.gmra.mxu0 %v99
    %v262 = vpop.f32.mrf.mxu0
    %v263 = vadd.f32 0.0, %v262
    %v264 = vpop.f32.mrf.mxu0
    %v265 = vadd.f32 0.0, %v264
    %266 = vmatmul.bf16.gmra.mxu0 %v101
    %v267 = vpop.f32.mrf.mxu0
    %v268 = vadd.f32 0.0, %v267
    %v269 = vpop.f32.mrf.mxu0
    %v270 = vadd.f32 0.0, %v269
    %271 = vmatmul.bf16.gmra.mxu0 %v103
    %v272 = vpop.f32.mrf.mxu0
    %v273 = vadd.f32 0.0, %v272
    %v274 = vpop.f32.mrf.mxu0
    %v275 = vadd.f32 0.0, %v274
    %276 = vmatmul.bf16.gmra.mxu0 %v105
    %v277 = vpop.f32.mrf.mxu0
    %v278 = vadd.f32 0.0, %v277
    %v279 = vpop.f32.mrf.mxu0
    %v280 = vadd.f32 0.0, %v279
    %281 = vmatmul.bf16.gmra.mxu0 %v107
    %v282 = vpop.f32.mrf.mxu0
    %v283 = vadd.f32 0.0, %v282
    %v284 = vpop.f32.mrf.mxu0
    %v285 = vadd.f32 0.0, %v284
    %286 = vmatmul.bf16.gmra.mxu0 %v109
    %v287 = vpop.f32.mrf.mxu0
    %v288 = vadd.f32 0.0, %v287
    %v289 = vpop.f32.mrf.mxu0
    %v290 = vadd.f32 0.0, %v289
    %291 = vmatmul.bf16.gmra.mxu0 %v111
    %v292 = vpop.f32.mrf.mxu0
    %v293 = vadd.f32 0.0, %v292
    %v294 = vpop.f32.mrf.mxu0
    %v295 = vadd.f32 0.0, %v294
    %296 = vmatmul.bf16.gmra.mxu0 %v113
    %v297 = vpop.f32.mrf.mxu0
    %v298 = vadd.f32 0.0, %v297
    %v299 = vpop.f32.mrf.mxu0
    %v300 = vadd.f32 0.0, %v299
    %301 = vmatmul.bf16.gmra.mxu0 %v115
    %v302 = vpop.f32.mrf.mxu0
    %v303 = vadd.f32 0.0, %v302
    %v304 = vpop.f32.mrf.mxu0
    %v305 = vadd.f32 0.0, %v304
    %306 = vmatmul.bf16.gmra.mxu0 %v117
    %v307 = vpop.f32.mrf.mxu0
    %v308 = vadd.f32 0.0, %v307
    %v309 = vpop.f32.mrf.mxu0
    %v310 = vadd.f32 0.0, %v309
    %311 = vmatmul.bf16.gmra.mxu0 %v119
    %v312 = vpop.f32.mrf.mxu0
    %v313 = vadd.f32 0.0, %v312
    %v314 = vpop.f32.mrf.mxu0
    %v315 = vadd.f32 0.0, %v314
    %316 = vmatmul.bf16.gmra.mxu0 %v121
    %v317 = vpop.f32.mrf.mxu0
    %v318 = vadd.f32 0.0, %v317
    %v319 = vpop.f32.mrf.mxu0
    %v320 = vadd.f32 0.0, %v319
    %321 = vmatmul.bf16.gmra.mxu0 %v123
    %v322 = vpop.f32.mrf.mxu0
    %v323 = vadd.f32 0.0, %v322
    %v324 = vpop.f32.mrf.mxu0
    %325 = vdwg.mxu0
    %326 = vmatpush.bf16.msra.mxu0 %v236
    %327 = vmatpush.bf16.msra.mxu0 %v235
    %328 = vmatpush.bf16.msra.mxu0 %v234
    %329 = vmatpush.bf16.msra.mxu0 %v233
    %330 = vmatpush.bf16.msra.mxu0 %v232
    %331 = vmatpush.bf16.msra.mxu0 %v231
    %332 = vmatpush.bf16.msra.mxu0 %v230
    %333 = vmatpush.bf16.msra.mxu0 %v229
    %334 = vmatmul.bf16.gmra.mxu0 %v100
    %v335 = vpop.f32.mrf.mxu0
    %v336 = vadd.f32 %v263, %v335
    %v337 = vpop.f32.mrf.mxu0
    %v338 = vadd.f32 %v265, %v337
    %339 = vmatmul.bf16.gmra.mxu0 %v102
    %v340 = vpop.f32.mrf.mxu0
    %v341 = vadd.f32 %v268, %v340
    %v342 = vpop.f32.mrf.mxu0
    %v343 = vadd.f32 %v270, %v342
    %344 = vmatmul.bf16.gmra.mxu0 %v104
    %v345 = vpop.f32.mrf.mxu0
    %v346 = vadd.f32 %v273, %v345
    %v347 = vpop.f32.mrf.mxu0
    %v348 = vadd.f32 %v275, %v347
    %349 = vmatmul.bf16.gmra.mxu0 %v106
    %v350 = vpop.f32.mrf.mxu0
    %v351 = vadd.f32 %v278, %v350
    %v352 = vpop.f32.mrf.mxu0
    %v353 = vadd.f32 %v280, %v352
    %354 = vmatmul.bf16.gmra.mxu0 %v108
    %v355 = vpop.f32.mrf.mxu0
    %v356 = vadd.f32 %v283, %v355
    %v357 = vpop.f32.mrf.mxu0
    %v358 = vadd.f32 %v285, %v357
    %359 = vmatmul.bf16.gmra.mxu0 %v110
    %v360 = vpop.f32.mrf.mxu0
    %v361 = vadd.f32 %v288, %v360
    %v362 = vpop.f32.mrf.mxu0
    %v363 = vadd.f32 %v290, %v362
    %364 = vmatmul.bf16.gmra.mxu0 %v112
    %v365 = vpop.f32.mrf.mxu0
    %v366 = vadd.f32 %v293, %v365
    %v367 = vpop.f32.mrf.mxu0
    %v368 = vadd.f32 %v295, %v367
    %369 = vmatmul.bf16.gmra.mxu0 %v114
    %v370 = vpop.f32.mrf.mxu0
    %v371 = vadd.f32 %v298, %v370
    %v372 = vpop.f32.mrf.mxu0
    %v373 = vadd.f32 %v300, %v372
    %374 = vmatmul.bf16.gmra.mxu0 %v116
    %v375 = vpop.f32.mrf.mxu0
    %v376 = vadd.f32 %v303, %v375
    %v377 = vpop.f32.mrf.mxu0
    %v378 = vadd.f32 %v305, %v377
    %379 = vmatmul.bf16.gmra.mxu0 %v118
    %v380 = vpop.f32.mrf.mxu0
    %v381 = vadd.f32 %v308, %v380
    %v382 = vpop.f32.mrf.mxu0
    %v383 = vadd.f32 %v310, %v382
    %384 = vmatmul.bf16.gmra.mxu0 %v120
    %v385 = vpop.f32.mrf.mxu0
    %v386 = vadd.f32 %v313, %v385
    %v387 = vpop.f32.mrf.mxu0
    %v388 = vadd.f32 %v315, %v387
    %389 = vmatmul.bf16.gmra.mxu0 %v122
    %v390 = vpop.f32.mrf.mxu0
    %v391 = vadd.f32 %v318, %v390
    %v392 = vpop.f32.mrf.mxu0
    %v393 = vadd.f32 %v320, %v392
    %394 = vmatmul.bf16.gmra.mxu0 %v124
    %v395 = vpop.f32.mrf.mxu0
    %v396 = vadd.f32 %v323, %v395
    %v397 = vpop.f32.mrf.mxu0
    %398 = vdwg.mxu0
    %v399 = vld [vmem:[#allocation4] sm:$0xff]
    %v400 = vld [vmem:[#allocation4 + $0x8] sm:$0xff]
    %v401 = vld [vmem:[#allocation4 + $0x10] sm:$0xff]
    %v402 = vld [vmem:[#allocation4 + $0x18] sm:$0xff]
    %v403 = vld [vmem:[#allocation4 + $0x20] sm:$0xff]
    %v404 = vld [vmem:[#allocation4 + $0x28] sm:$0xff]
    %v405 = vld [vmem:[#allocation4 + $0x30] sm:$0xff]
    %v406 = vld [vmem:[#allocation4 + $0x38] sm:$0xff]
    %v407 = vld [vmem:[#allocation4 + $0x40] sm:$0xff]
    %v408 = vld [vmem:[#allocation4 + $0x48] sm:$0xff]
    %v409 = vld [vmem:[#allocation4 + $0x50] sm:$0xff]
    %v410 = vld [vmem:[#allocation4 + $0x58] sm:$0xff]
    %v411 = vld [vmem:[#allocation4 + $0x60] sm:$0xff]
    %v412 = vld [vmem:[#allocation4 + $0x68] sm:$0xff]
    %v413 = vld [vmem:[#allocation4 + $0x70] sm:$0xff]
    %v414 = vld [vmem:[#allocation4 + $0x78] sm:$0xff]
    %v415 = vld [vmem:[#allocation4 + $0x80] sm:$0xff]
    %v416 = vld [vmem:[#allocation4 + $0x88] sm:$0xff]
    %v417 = vld [vmem:[#allocation4 + $0x90] sm:$0xff]
    %v418 = vld [vmem:[#allocation4 + $0x98] sm:$0xff]
    %v419 = vld [vmem:[#allocation4 + $0xa0] sm:$0xff]
    %v420 = vld [vmem:[#allocation4 + $0xa8] sm:$0xff]
    %v421 = vld [vmem:[#allocation4 + $0xb0] sm:$0xff]
    %v422 = vld [vmem:[#allocation4 + $0xb8] sm:$0xff]
    %v423 = vld [vmem:[#allocation4 + $0xc0] sm:$0xff]
    %v424 = vld [vmem:[#allocation4 + $0xc8] sm:$0xff]
    %v425 = vld [vmem:[#allocation4 + $0xd0] sm:$0xff]
    %v426 = vld [vmem:[#allocation4 + $0xd8] sm:$0xff]
    %v427 = vld [vmem:[#allocation4 + $0xe0] sm:$0xff]
    %v428 = vld [vmem:[#allocation4 + $0xe8] sm:$0xff]
    %v429 = vld [vmem:[#allocation4 + $0xf0] sm:$0xff]
    %v430 = vld [vmem:[#allocation4 + $0xf8] sm:$0xff]
    %v431 = vld [vmem:[#allocation4 + $0x100] sm:$0xff]
    %v432 = vld [vmem:[#allocation4 + $0x108] sm:$0xff]
    %v433 = vld [vmem:[#allocation4 + $0x110] sm:$0xff]
    %v434 = vld [vmem:[#allocation4 + $0x118] sm:$0xff]
    %v435 = vld [vmem:[#allocation4 + $0x120] sm:$0xff]
    %v436 = vld [vmem:[#allocation4 + $0x128] sm:$0xff]
    %v437 = vld [vmem:[#allocation4 + $0x130] sm:$0xff]
    %v438 = vld [vmem:[#allocation4 + $0x138] sm:$0xff]
    %v439 = vld [vmem:[#allocation4 + $0x140] sm:$0xff]
    %v440 = vld [vmem:[#allocation4 + $0x148] sm:$0xff]
    %v441 = vld [vmem:[#allocation4 + $0x150] sm:$0xff]
    %v442 = vld [vmem:[#allocation4 + $0x158] sm:$0xff]
    %v443 = vld [vmem:[#allocation4 + $0x160] sm:$0xff]
    %v444 = vld [vmem:[#allocation4 + $0x168] sm:$0xff]
    %v445 = vld [vmem:[#allocation4 + $0x170] sm:$0xff]
    %v446 = vld [vmem:[#allocation4 + $0x178] sm:$0xff]
    %v447 = vld [vmem:[#allocation4 + $0x180] sm:$0xf]
    %v448 = vld [vmem:[#allocation4 + $0x188] sm:$0xf]
    %v449 = vld [vmem:[%s3] sm:$0xff]
    %v450 = vld [vmem:[%s3 + $0x8] sm:$0xff]
    %v451 = vld [vmem:[%s3 + $0x10] sm:$0xff]
    %v452 = vld [vmem:[%s3 + $0x18] sm:$0xff]
    %v453 = vld [vmem:[%s3 + $0x20] sm:$0xff]
    %v454 = vld [vmem:[%s3 + $0x28] sm:$0xff]
    %v455 = vld [vmem:[%s3 + $0x30] sm:$0xff]
    %v456 = vld [vmem:[%s3 + $0x38] sm:$0xff]
    %v457 = vld [vmem:[%s3 + $0x40] sm:$0xff]
    %v458 = vld [vmem:[%s3 + $0x48] sm:$0xff]
    %v459 = vld [vmem:[%s3 + $0x50] sm:$0xff]
    %v460 = vld [vmem:[%s3 + $0x58] sm:$0xff]
    %v461 = vld [vmem:[%s3 + $0x60] sm:$0xff]
    %v462 = vld [vmem:[%s3 + $0x68] sm:$0xff]
    %v463 = vld [vmem:[%s3 + $0x70] sm:$0xff]
    %v464 = vld [vmem:[%s3 + $0x78] sm:$0xff]
    %466 = vset.pattern.permute.xlu0 0
    %467 = vperm.xlu0 %466, %v449
    %v468 = vpop.permute.xlu0 %467
    %471 = vset.pattern.permute.xlu0 0
    %472 = vperm.xlu0 %471, %v450
    %v473 = vpop.permute.xlu0 %472
    %476 = vset.pattern.permute.xlu0 0
    %477 = vperm.xlu0 %476, %v451
    %v478 = vpop.permute.xlu0 %477
    %481 = vset.pattern.permute.xlu0 0
    %482 = vperm.xlu0 %481, %v452
    %v483 = vpop.permute.xlu0 %482
    %486 = vset.pattern.permute.xlu0 0
    %487 = vperm.xlu0 %486, %v453
    %v488 = vpop.permute.xlu0 %487
    %491 = vset.pattern.permute.xlu0 0
    %492 = vperm.xlu0 %491, %v454
    %v493 = vpop.permute.xlu0 %492
    %496 = vset.pattern.permute.xlu0 0
    %497 = vperm.xlu0 %496, %v455
    %v498 = vpop.permute.xlu0 %497
    %501 = vset.pattern.permute.xlu0 0
    %502 = vperm.xlu0 %501, %v456
    %v503 = vpop.permute.xlu0 %502
    %506 = vset.pattern.permute.xlu0 0
    %507 = vperm.xlu0 %506, %v457
    %v508 = vpop.permute.xlu0 %507
    %511 = vset.pattern.permute.xlu0 0
    %512 = vperm.xlu0 %511, %v458
    %v513 = vpop.permute.xlu0 %512
    %516 = vset.pattern.permute.xlu0 0
    %517 = vperm.xlu0 %516, %v459
    %v518 = vpop.permute.xlu0 %517
    %521 = vset.pattern.permute.xlu0 0
    %522 = vperm.xlu0 %521, %v460
    %v523 = vpop.permute.xlu0 %522
    %526 = vset.pattern.permute.xlu0 0
    %527 = vperm.xlu0 %526, %v461
    %v528 = vpop.permute.xlu0 %527
    %531 = vset.pattern.permute.xlu0 0
    %532 = vperm.xlu0 %531, %v462
    %v533 = vpop.permute.xlu0 %532
    %536 = vset.pattern.permute.xlu0 0
    %537 = vperm.xlu0 %536, %v463
    %v538 = vpop.permute.xlu0 %537
    %541 = vset.pattern.permute.xlu0 0
    %542 = vperm.xlu0 %541, %v464
    %v543 = vpop.permute.xlu0 %542
    %545 = vxpose.xlu0.b32.start [1/16] %v336, 128
    %546 = vxpose.xlu0.b32.cont [2/16] %v338, 128
    %547 = vxpose.xlu0.b32.cont [3/16] %v341, 128
    %548 = vxpose.xlu0.b32.cont [4/16] %v343, 128
    %549 = vxpose.xlu0.b32.cont [5/16] %v346, 128
    %550 = vxpose.xlu0.b32.cont [6/16] %v348, 128
    %551 = vxpose.xlu0.b32.cont [7/16] %v351, 128
    %552 = vxpose.xlu0.b32.cont [8/16] %v353, 128
    %553 = vxpose.xlu0.b32.cont [9/16] %v356, 128
    %554 = vxpose.xlu0.b32.cont [10/16] %v358, 128
    %555 = vxpose.xlu0.b32.cont [11/16] %v361, 128
    %556 = vxpose.xlu0.b32.cont [12/16] %v363, 128
    %557 = vxpose.xlu0.b32.cont [13/16] %v366, 128
    %558 = vxpose.xlu0.b32.cont [14/16] %v368, 128
    %559 = vxpose.xlu0.b32.cont [15/16] %v371, 128
    %560 = vxpose.xlu0.b32.end [16/16] %v373, 128
    %v561 = vpop.trf.xlu0
    %v562 = vpop.trf.xlu0
    %v563 = vpop.trf.xlu0
    %v564 = vpop.trf.xlu0
    %v565 = vpop.trf.xlu0
    %v566 = vpop.trf.xlu0
    %v567 = vpop.trf.xlu0
    %v568 = vpop.trf.xlu0
    %v569 = vpop.trf.xlu0
    %v570 = vpop.trf.xlu0
    %v571 = vpop.trf.xlu0
    %v572 = vpop.trf.xlu0
    %v573 = vpop.trf.xlu0
    %v574 = vpop.trf.xlu0
    %v575 = vpop.trf.xlu0
    %v576 = vpop.trf.xlu0
    %577 = vxpose.xlu0.b32.start [1/16] %v376, 128
    %578 = vxpose.xlu0.b32.cont [2/16] %v378, 128
    %579 = vxpose.xlu0.b32.cont [3/16] %v381, 128
    %580 = vxpose.xlu0.b32.cont [4/16] %v383, 128
    %581 = vxpose.xlu0.b32.cont [5/16] %v386, 128
    %582 = vxpose.xlu0.b32.cont [6/16] %v388, 128
    %583 = vxpose.xlu0.b32.cont [7/16] %v391, 128
    %584 = vxpose.xlu0.b32.cont [8/16] %v393, 128
    %585 = vxpose.xlu0.b32.cont [9/16] %v396, 128
    %586 = vxpose.xlu0.b32.cont [10/16] 0.0, 128
    %587 = vxpose.xlu0.b32.cont [11/16] 0.0, 128
    %588 = vxpose.xlu0.b32.cont [12/16] 0.0, 128
    %589 = vxpose.xlu0.b32.cont [13/16] 0.0, 128
    %590 = vxpose.xlu0.b32.cont [14/16] 0.0, 128
    %591 = vxpose.xlu0.b32.cont [15/16] 0.0, 128
    %592 = vxpose.xlu0.b32.end [16/16] 0.0, 128
    %v593 = vpop.trf.xlu0
    %v594 = vpop.trf.xlu0
    %v595 = vpop.trf.xlu0
    %v596 = vpop.trf.xlu0
    %v597 = vpop.trf.xlu0
    %v598 = vpop.trf.xlu0
    %v599 = vpop.trf.xlu0
    %v600 = vpop.trf.xlu0
    %v601 = vpop.trf.xlu0
    %v602 = vpop.trf.xlu0
    %v603 = vpop.trf.xlu0
    %v604 = vpop.trf.xlu0
    %v605 = vpop.trf.xlu0
    %v606 = vpop.trf.xlu0
    %v607 = vpop.trf.xlu0
    %v608 = vpop.trf.xlu0
    %vm609 = vcmask 556032
    %v611 = vsel %vm609, %v593, 0
    %v614 = vsel %vm609, %v594, 0
    %v617 = vsel %vm609, %v595, 0
    %v620 = vsel %vm609, %v596, 0
    %v623 = vsel %vm609, %v597, 0
    %v626 = vsel %vm609, %v598, 0
    %v629 = vsel %vm609, %v599, 0
    %v632 = vsel %vm609, %v600, 0
    %v635 = vsel %vm609, %v601, 0
    %v638 = vsel %vm609, %v602, 0
    %v641 = vsel %vm609, %v603, 0
    %v644 = vsel %vm609, %v604, 0
    %v647 = vsel %vm609, %v605, 0
    %v650 = vsel %vm609, %v606, 0
    %v653 = vsel %vm609, %v607, 0
    %v656 = vsel %vm609, %v608, 0
    %vm658 = vcmask 1043456
    %v660 = vsel %vm658, %v447, 0
    %v663 = vsel %vm658, %v448, 0
    %665 = vmatpush.msra.mxu0 %v429
    %666 = vmatpush.msra.mxu0 %v427
    %667 = vmatpush.msra.mxu0 %v425
    %668 = vmatpush.msra.mxu0 %v423
    %669 = vmatpush.msra.mxu0 %v421
    %670 = vmatpush.msra.mxu0 %v419
    %671 = vmatpush.msra.mxu0 %v417
    %672 = vmatpush.msra.mxu0 %v415
    %673 = vmatpush.msra.mxu0 %v413
    %674 = vmatpush.msra.mxu0 %v411
    %675 = vmatpush.msra.mxu0 %v409
    %676 = vmatpush.msra.mxu0 %v407
    %677 = vmatpush.msra.mxu0 %v405
    %678 = vmatpush.msra.mxu0 %v403
    %679 = vmatpush.msra.mxu0 %v401
    %680 = vmatpush.msra.mxu0 %v399
    %681 = vmatmul.f32.gmra.mxu0 %v561
    %v682 = vpop.f32.mrf.mxu0
    %v683 = vadd.f32 %v468, %v682
    %684 = vmatmul.f32.gmra.mxu0 %v562
    %v685 = vpop.f32.mrf.mxu0
    %v686 = vadd.f32 %v473, %v685
    %687 = vmatmul.f32.gmra.mxu0 %v563
    %v688 = vpop.f32.mrf.mxu0
    %v689 = vadd.f32 %v478, %v688
    %690 = vmatmul.f32.gmra.mxu0 %v564
    %v691 = vpop.f32.mrf.mxu0
    %v692 = vadd.f32 %v483, %v691
    %693 = vmatmul.f32.gmra.mxu0 %v565
    %v694 = vpop.f32.mrf.mxu0
    %v695 = vadd.f32 %v488, %v694
    %696 = vmatmul.f32.gmra.mxu0 %v566
    %v697 = vpop.f32.mrf.mxu0
    %v698 = vadd.f32 %v493, %v697
    %699 = vmatmul.f32.gmra.mxu0 %v567
    %v700 = vpop.f32.mrf.mxu0
    %v701 = vadd.f32 %v498, %v700
    %702 = vmatmul.f32.gmra.mxu0 %v568
    %v703 = vpop.f32.mrf.mxu0
    %v704 = vadd.f32 %v503, %v703
    %705 = vmatmul.f32.gmra.mxu0 %v569
    %v706 = vpop.f32.mrf.mxu0
    %v707 = vadd.f32 %v508, %v706
    %708 = vmatmul.f32.gmra.mxu0 %v570
    %v709 = vpop.f32.mrf.mxu0
    %v710 = vadd.f32 %v513, %v709
    %711 = vmatmul.f32.gmra.mxu0 %v571
    %v712 = vpop.f32.mrf.mxu0
    %v713 = vadd.f32 %v518, %v712
    %714 = vmatmul.f32.gmra.mxu0 %v572
    %v715 = vpop.f32.mrf.mxu0
    %v716 = vadd.f32 %v523, %v715
    %717 = vmatmul.f32.gmra.mxu0 %v573
    %v718 = vpop.f32.mrf.mxu0
    %v719 = vadd.f32 %v528, %v718
    %720 = vmatmul.f32.gmra.mxu0 %v574
    %v721 = vpop.f32.mrf.mxu0
    %v722 = vadd.f32 %v533, %v721
    %723 = vmatmul.f32.gmra.mxu0 %v575
    %v724 = vpop.f32.mrf.mxu0
    %v725 = vadd.f32 %v538, %v724
    %726 = vmatmul.f32.gmra.mxu0 %v576
    %v727 = vpop.f32.mrf.mxu0
    %v728 = vadd.f32 %v543, %v727
    %729 = vdwg.mxu0
    %730 = vmatpush.msra.mxu0 0.0
    %731 = vmatpush.msra.mxu0 0.0
    %732 = vmatpush.msra.mxu0 0.0
    %733 = vmatpush.msra.mxu0 0.0
    %734 = vmatpush.msra.mxu0 0.0
    %735 = vmatpush.msra.mxu0 0.0
    %736 = vmatpush.msra.mxu0 0.0
    %737 = vmatpush.msra.mxu0 %v660
    %738 = vmatpush.msra.mxu0 %v445
    %739 = vmatpush.msra.mxu0 %v443
    %740 = vmatpush.msra.mxu0 %v441
    %741 = vmatpush.msra.mxu0 %v439
    %742 = vmatpush.msra.mxu0 %v437
    %743 = vmatpush.msra.mxu0 %v435
    %744 = vmatpush.msra.mxu0 %v433
    %745 = vmatpush.msra.mxu0 %v431
    %746 = vmatmul.f32.gmra.mxu0 %v611
    %v747 = vpop.f32.mrf.mxu0
    %v748 = vadd.f32 %v683, %v747
    %749 = vmatmul.f32.gmra.mxu0 %v614
    %v750 = vpop.f32.mrf.mxu0
    %v751 = vadd.f32 %v686, %v750
    %752 = vmatmul.f32.gmra.mxu0 %v617
    %v753 = vpop.f32.mrf.mxu0
    %v754 = vadd.f32 %v689, %v753
    %755 = vmatmul.f32.gmra.mxu0 %v620
    %v756 = vpop.f32.mrf.mxu0
    %v757 = vadd.f32 %v692, %v756
    %758 = vmatmul.f32.gmra.mxu0 %v623
    %v759 = vpop.f32.mrf.mxu0
    %v760 = vadd.f32 %v695, %v759
    %761 = vmatmul.f32.gmra.mxu0 %v626
    %v762 = vpop.f32.mrf.mxu0
    %v763 = vadd.f32 %v698, %v762
    %764 = vmatmul.f32.gmra.mxu0 %v629
    %v765 = vpop.f32.mrf.mxu0
    %v766 = vadd.f32 %v701, %v765
    %767 = vmatmul.f32.gmra.mxu0 %v632
    %v768 = vpop.f32.mrf.mxu0
    %v769 = vadd.f32 %v704, %v768
    %770 = vmatmul.f32.gmra.mxu0 %v635
    %v771 = vpop.f32.mrf.mxu0
    %v772 = vadd.f32 %v707, %v771
    %773 = vmatmul.f32.gmra.mxu0 %v638
    %v774 = vpop.f32.mrf.mxu0
    %v775 = vadd.f32 %v710, %v774
    %776 = vmatmul.f32.gmra.mxu0 %v641
    %v777 = vpop.f32.mrf.mxu0
    %v778 = vadd.f32 %v713, %v777
    %779 = vmatmul.f32.gmra.mxu0 %v644
    %v780 = vpop.f32.mrf.mxu0
    %v781 = vadd.f32 %v716, %v780
    %782 = vmatmul.f32.gmra.mxu0 %v647
    %v783 = vpop.f32.mrf.mxu0
    %v784 = vadd.f32 %v719, %v783
    %785 = vmatmul.f32.gmra.mxu0 %v650
    %v786 = vpop.f32.mrf.mxu0
    %v787 = vadd.f32 %v722, %v786
    %788 = vmatmul.f32.gmra.mxu0 %v653
    %v789 = vpop.f32.mrf.mxu0
    %v790 = vadd.f32 %v725, %v789
    %791 = vmatmul.f32.gmra.mxu0 %v656
    %v792 = vpop.f32.mrf.mxu0
    %v793 = vadd.f32 %v728, %v792
    %794 = vdwg.mxu0
    %795 = vmatpush.msra.mxu0 %v430
    %796 = vmatpush.msra.mxu0 %v428
    %797 = vmatpush.msra.mxu0 %v426
    %798 = vmatpush.msra.mxu0 %v424
    %799 = vmatpush.msra.mxu0 %v422
    %800 = vmatpush.msra.mxu0 %v420
    %801 = vmatpush.msra.mxu0 %v418
    %802 = vmatpush.msra.mxu0 %v416
    %803 = vmatpush.msra.mxu0 %v414
    %804 = vmatpush.msra.mxu0 %v412
    %805 = vmatpush.msra.mxu0 %v410
    %806 = vmatpush.msra.mxu0 %v408
    %807 = vmatpush.msra.mxu0 %v406
    %808 = vmatpush.msra.mxu0 %v404
    %809 = vmatpush.msra.mxu0 %v402
    %810 = vmatpush.msra.mxu0 %v400
    %811 = vmatmul.f32.gmra.mxu0 %v561
    %v812 = vpop.f32.mrf.mxu0
    %v813 = vadd.f32 %v468, %v812
    %814 = vmatmul.f32.gmra.mxu0 %v562
    %v815 = vpop.f32.mrf.mxu0
    %v816 = vadd.f32 %v473, %v815
    %817 = vmatmul.f32.gmra.mxu0 %v563
    %v818 = vpop.f32.mrf.mxu0
    %v819 = vadd.f32 %v478, %v818
    %820 = vmatmul.f32.gmra.mxu0 %v564
    %v821 = vpop.f32.mrf.mxu0
    %v822 = vadd.f32 %v483, %v821
    %823 = vmatmul.f32.gmra.mxu0 %v565
    %v824 = vpop.f32.mrf.mxu0
    %v825 = vadd.f32 %v488, %v824
    %826 = vmatmul.f32.gmra.mxu0 %v566
    %v827 = vpop.f32.mrf.mxu0
    %v828 = vadd.f32 %v493, %v827
    %829 = vmatmul.f32.gmra.mxu0 %v567
    %v830 = vpop.f32.mrf.mxu0
    %v831 = vadd.f32 %v498, %v830
    %832 = vmatmul.f32.gmra.mxu0 %v568
    %v833 = vpop.f32.mrf.mxu0
    %v834 = vadd.f32 %v503, %v833
    %835 = vmatmul.f32.gmra.mxu0 %v569
    %v836 = vpop.f32.mrf.mxu0
    %v837 = vadd.f32 %v508, %v836
    %838 = vmatmul.f32.gmra.mxu0 %v570
    %v839 = vpop.f32.mrf.mxu0
    %v840 = vadd.f32 %v513, %v839
    %841 = vmatmul.f32.gmra.mxu0 %v571
    %v842 = vpop.f32.mrf.mxu0
    %v843 = vadd.f32 %v518, %v842
    %844 = vmatmul.f32.gmra.mxu0 %v572
    %v845 = vpop.f32.mrf.mxu0
    %v846 = vadd.f32 %v523, %v845
    %847 = vmatmul.f32.gmra.mxu0 %v573
    %v848 = vpop.f32.mrf.mxu0
    %v849 = vadd.f32 %v528, %v848
    %850 = vmatmul.f32.gmra.mxu0 %v574
    %v851 = vpop.f32.mrf.mxu0
    %v852 = vadd.f32 %v533, %v851
    %853 = vmatmul.f32.gmra.mxu0 %v575
    %v854 = vpop.f32.mrf.mxu0
    %v855 = vadd.f32 %v538, %v854
    %856 = vmatmul.f32.gmra.mxu0 %v576
    %v857 = vpop.f32.mrf.mxu0
    %v858 = vadd.f32 %v543, %v857
    %859 = vdwg.mxu0
    %860 = vmatpush.msra.mxu0 0.0
    %861 = vmatpush.msra.mxu0 0.0
    %862 = vmatpush.msra.mxu0 0.0
    %863 = vmatpush.msra.mxu0 0.0
    %864 = vmatpush.msra.mxu0 0.0
    %865 = vmatpush.msra.mxu0 0.0
    %866 = vmatpush.msra.mxu0 0.0
    %867 = vmatpush.msra.mxu0 %v663
    %868 = vmatpush.msra.mxu0 %v446
    %869 = vmatpush.msra.mxu0 %v444
    %870 = vmatpush.msra.mxu0 %v442
    %871 = vmatpush.msra.mxu0 %v440
    %872 = vmatpush.msra.mxu0 %v438
    %873 = vmatpush.msra.mxu0 %v436
    %874 = vmatpush.msra.mxu0 %v434
    %875 = vmatpush.msra.mxu0 %v432
    %876 = vmatmul.f32.gmra.mxu0 %v611
    %v877 = vpop.f32.mrf.mxu0
    %v878 = vadd.f32 %v813, %v877
    %879 = vmatmul.f32.gmra.mxu0 %v614
    %v880 = vpop.f32.mrf.mxu0
    %v881 = vadd.f32 %v816, %v880
    %882 = vmatmul.f32.gmra.mxu0 %v617
    %v883 = vpop.f32.mrf.mxu0
    %v884 = vadd.f32 %v819, %v883
    %885 = vmatmul.f32.gmra.mxu0 %v620
    %v886 = vpop.f32.mrf.mxu0
    %v887 = vadd.f32 %v822, %v886
    %888 = vmatmul.f32.gmra.mxu0 %v623
    %v889 = vpop.f32.mrf.mxu0
    %v890 = vadd.f32 %v825, %v889
    %891 = vmatmul.f32.gmra.mxu0 %v626
    %v892 = vpop.f32.mrf.mxu0
    %v893 = vadd.f32 %v828, %v892
    %894 = vmatmul.f32.gmra.mxu0 %v629
    %v895 = vpop.f32.mrf.mxu0
    %v896 = vadd.f32 %v831, %v895
    %897 = vmatmul.f32.gmra.mxu0 %v632
    %v898 = vpop.f32.mrf.mxu0
    %v899 = vadd.f32 %v834, %v898
    %900 = vmatmul.f32.gmra.mxu0 %v635
    %v901 = vpop.f32.mrf.mxu0
    %v902 = vadd.f32 %v837, %v901
    %903 = vmatmul.f32.gmra.mxu0 %v638
    %v904 = vpop.f32.mrf.mxu0
    %v905 = vadd.f32 %v840, %v904
    %906 = vmatmul.f32.gmra.mxu0 %v641
    %v907 = vpop.f32.mrf.mxu0
    %v908 = vadd.f32 %v843, %v907
    %909 = vmatmul.f32.gmra.mxu0 %v644
    %v910 = vpop.f32.mrf.mxu0
    %v911 = vadd.f32 %v846, %v910
    %912 = vmatmul.f32.gmra.mxu0 %v647
    %v913 = vpop.f32.mrf.mxu0
    %v914 = vadd.f32 %v849, %v913
    %915 = vmatmul.f32.gmra.mxu0 %v650
    %v916 = vpop.f32.mrf.mxu0
    %v917 = vadd.f32 %v852, %v916
    %918 = vmatmul.f32.gmra.mxu0 %v653
    %v919 = vpop.f32.mrf.mxu0
    %v920 = vadd.f32 %v855, %v919
    %921 = vmatmul.f32.gmra.mxu0 %v656
    %v922 = vpop.f32.mrf.mxu0
    %v923 = vadd.f32 %v858, %v922
    %924 = vdwg.mxu0
    %925 = vst [vmem:[%s4] sm:$0xff] %v748
    %926 = vst.msk [vmem:[%s4 + $0x8] sm:$0xff] %vm609, %v878
    %927 = vst [vmem:[%s4 + $0x10] sm:$0xff] %v751
    %928 = vst.msk [vmem:[%s4 + $0x18] sm:$0xff] %vm609, %v881
    %929 = vst [vmem:[%s4 + $0x20] sm:$0xff] %v754
    %930 = vst.msk [vmem:[%s4 + $0x28] sm:$0xff] %vm609, %v884
    %931 = vst [vmem:[%s4 + $0x30] sm:$0xff] %v757
    %932 = vst.msk [vmem:[%s4 + $0x38] sm:$0xff] %vm609, %v887
    %933 = vst [vmem:[%s4 + $0x40] sm:$0xff] %v760
    %934 = vst.msk [vmem:[%s4 + $0x48] sm:$0xff] %vm609, %v890
    %935 = vst [vmem:[%s4 + $0x50] sm:$0xff] %v763
    %936 = vst.msk [vmem:[%s4 + $0x58] sm:$0xff] %vm609, %v893
    %937 = vst [vmem:[%s4 + $0x60] sm:$0xff] %v766
    %938 = vst.msk [vmem:[%s4 + $0x68] sm:$0xff] %vm609, %v896
    %939 = vst [vmem:[%s4 + $0x70] sm:$0xff] %v769
    %940 = vst.msk [vmem:[%s4 + $0x78] sm:$0xff] %vm609, %v899
    %941 = vst [vmem:[%s4 + $0x80] sm:$0xff] %v772
    %942 = vst.msk [vmem:[%s4 + $0x88] sm:$0xff] %vm609, %v902
    %943 = vst [vmem:[%s4 + $0x90] sm:$0xff] %v775
    %944 = vst.msk [vmem:[%s4 + $0x98] sm:$0xff] %vm609, %v905
    %945 = vst [vmem:[%s4 + $0xa0] sm:$0xff] %v778
    %946 = vst.msk [vmem:[%s4 + $0xa8] sm:$0xff] %vm609, %v908
    %947 = vst [vmem:[%s4 + $0xb0] sm:$0xff] %v781
    %948 = vst.msk [vmem:[%s4 + $0xb8] sm:$0xff] %vm609, %v911
    %949 = vst [vmem:[%s4 + $0xc0] sm:$0xff] %v784
    %950 = vst.msk [vmem:[%s4 + $0xc8] sm:$0xff] %vm609, %v914
    %951 = vst [vmem:[%s4 + $0xd0] sm:$0xff] %v787
    %952 = vst.msk [vmem:[%s4 + $0xd8] sm:$0xff] %vm609, %v917
    %953 = vst [vmem:[%s4 + $0xe0] sm:$0xff] %v790
    %954 = vst.msk [vmem:[%s4 + $0xe8] sm:$0xff] %vm609, %v920
    %955 = vst [vmem:[%s4 + $0xf0] sm:$0xff] %v793
    %956 = vst.msk [vmem:[%s4 + $0xf8] sm:$0xff] %vm609, %v923
    // Predicated region
    $region26: #{tpu_custom_call.1} parent=1 // pred_check
      _
    $region27: #{tpu_custom_call.1} parent=1 // pred_check_branch
      %958 = sbr.rel (0) target = $region29
    $region28: #{tpu_custom_call.1} parent=1 // pred_region
      _
    $region29: #{tpu_custom_call.1} parent=1 // pred_fallthru
      _
    // Predicated region
    $region30: #{tpu_custom_call.1} parent=1 // pred_check
      _
    $region31: #{tpu_custom_call.1} parent=1 // pred_check_branch
      %960 = sbr.rel (0) target = $region33
    $region32: #{tpu_custom_call.1} parent=1 // pred_region
      _
    $region33: #{tpu_custom_call.1} parent=1 // pred_fallthru
      _
    %961 = vsyncpa [#allocation3], 1
    %962 = vsyncpa [#allocation5], 1

// kernel: tpu_custom_call.1
$region0: #{tpu_custom_call.1}
  #allocation0 [shape = 'u32[]', space=smem, size = 0x4, offset = 0x4, fixed_abs, tag = 'smem constant byte address 0x4 - core index']
  #allocation1 [shape = 'u32[72,128]{1,0:T(1,128)}', space=vmem, size = 0x9000, scoped, tag = 'internal scratch']
  %s0 = inlined_call_operand.hbm [shape: f32[196,256], index: 0, kind: input, shape index: {}]
  %s1 = inlined_call_operand.vmem [shape: bf16[256,128], index: 1, kind: input, shape index: {}]
  %s2 = inlined_call_operand.hbm [shape: f32[196,196], index: 2, kind: input, shape index: {}]
  %s3 = inlined_call_operand.vmem [shape: f32[128,1], index: 3, kind: input, shape index: {}]
  %s4 = inlined_call_operand.vmem [shape: f32[128,196], index: 4, kind: output, shape index: {}]
  %s5 = sld [smem:[#allocation0]]
  $region34: #{tpu_custom_call.1} parent=0
    _
  %s7 = ssub.s32 1, %s5
  %s8 = scalar_select 0, %s7, %s5
  $region1: #{tpu_custom_call.1} parent=0
    #allocation2 [shape = 'u8[204800]{0}', space=vmem, size = 0x32000, scoped, tag = 'input window, operand 0, single buffered']
    #allocation3 [shape = 's32[1]{0}', space=sflag, size = 0x4, scoped, tag = 'scoped memory for tpu_custom_call.1']
    #allocation4 [shape = 'u8[204800]{0}', space=vmem, size = 0x32000, scoped, tag = 'input window, operand 2, single buffered']
    #allocation5 [shape = 's32[1]{0}', space=sflag, size = 0x4, scoped, tag = 'scoped memory for tpu_custom_call.1']
    %9 = vsyncpa [#allocation3], 0
    %10 = vsyncpa [#allocation5], 0
    // Predicated region
    $region2: #{tpu_custom_call.1} parent=1 // pred_check
      _
    $region3: #{tpu_custom_call.1} parent=1 // pred_check_branch
      %12 = sbr.rel (0) target = $region5
    $region4: #{tpu_custom_call.1} parent=1 // pred_region
      %14 = vsyncadd [#allocation3], 0
      %s15 = sshll.u32 %s0, 4
      %s16 = int_to_ptr.hbm [resolvable:$true] %s15
      %s17 = sshll.u32 [#allocation2], 4
      %s18 = int_to_ptr.vmem [resolvable:$true] %s17
      %23 = dma.hbm_to_vmem [thread:$0]  %s16, 6400, %s18, [#allocation3], 256, 256, 16
    $region5: #{tpu_custom_call.1} parent=1 // pred_fallthru
      _
    // Predicated region
    $region6: #{tpu_custom_call.1} parent=1 // pred_check
      _
    $region7: #{tpu_custom_call.1} parent=1 // pred_check_branch
      %25 = sbr.rel (0) target = $region9
    $region8: #{tpu_custom_call.1} parent=1 // pred_region
      _
    $region9: #{tpu_custom_call.1} parent=1 // pred_fallthru
      _
    // Predicated region
    $region10: #{tpu_custom_call.1} parent=1 // pred_check
      _
    $region11: #{tpu_custom_call.1} parent=1 // pred_check_branch
      %27 = sbr.rel (0) target = $region13
    $region12: #{tpu_custom_call.1} parent=1 // pred_region
      %29 = vsyncadd [#allocation5], 0
      %s30 = sshll.u32 %s2, 4
      %s31 = int_to_ptr.hbm [resolvable:$true] %s30
      %s32 = sshll.u32 [#allocation4], 4
      %s33 = int_to_ptr.vmem [resolvable:$true] %s32
      %38 = dma.hbm_to_vmem [thread:$0]  %s31, 6400, %s33, [#allocation5], 256, 256, 16
    $region13: #{tpu_custom_call.1} parent=1 // pred_fallthru
      _
    // Predicated region
    $region14: #{tpu_custom_call.1} parent=1 // pred_check
      _
    $region15: #{tpu_custom_call.1} parent=1 // pred_check_branch
      %40 = sbr.rel (0) target = $region17
    $region16: #{tpu_custom_call.1} parent=1 // pred_region
      _
    $region17: #{tpu_custom_call.1} parent=1 // pred_fallthru
      _
    // Predicated region
    $region18: #{tpu_custom_call.1} parent=1 // pred_check
      _
    $region19: #{tpu_custom_call.1} parent=1 // pred_check_branch
      %42 = sbr.rel (0) target = $region21
    $region20: #{tpu_custom_call.1} parent=1 // pred_region
      %44 = dma.done [#allocation3], 6400
    $region21: #{tpu_custom_call.1} parent=1 // pred_fallthru
      _
    // Predicated region
    $region22: #{tpu_custom_call.1} parent=1 // pred_check
      _
    $region23: #{tpu_custom_call.1} parent=1 // pred_check_branch
      %46 = sbr.rel (0) target = $region25
    $region24: #{tpu_custom_call.1} parent=1 // pred_region
      %48 = dma.done [#allocation5], 6400
    $region25: #{tpu_custom_call.1} parent=1 // pred_fallthru
      _
    %v49 = vld [vmem:[#allocation2] sm:$0xff]
    %v50 = vld [vmem:[#allocation2 + $0x8] sm:$0xff]
    %v51 = vld [vmem:[#allocation2 + $0x10] sm:$0xff]
    %v52 = vld [vmem:[#allocation2 + $0x18] sm:$0xff]
    %v53 = vld [vmem:[#allocation2 + $0x20] sm:$0xff]
    %v54 = vld [vmem:[#allocation2 + $0x28] sm:$0xff]
    %v55 = vld [vmem:[#allocation2 + $0x30] sm:$0xff]
    %v56 = vld [vmem:[#allocation2 + $0x38] sm:$0xff]
    %v57 = vld [vmem:[#allocation2 + $0x40] sm:$0xff]
    %v58 = vld [vmem:[#allocation2 + $0x48] sm:$0xff]
    %v59 = vld [vmem:[#allocation2 + $0x50] sm:$0xff]
    %v60 = vld [vmem:[#allocation2 + $0x58] sm:$0xff]
    %v61 = vld [vmem:[#allocation2 + $0x60] sm:$0xff]
    %v62 = vld [vmem:[#allocation2 + $0x68] sm:$0xff]
    %v63 = vld [vmem:[#allocation2 + $0x70] sm:$0xff]
    %v64 = vld [vmem:[#allocation2 + $0x78] sm:$0xff]
    %v65 = vld [vmem:[#allocation2 + $0x80] sm:$0xff]
    %v66 = vld [vmem:[#allocation2 + $0x88] sm:$0xff]
    %v67 = vld [vmem:[#allocation2 + $0x90] sm:$0xff]
    %v68 = vld [vmem:[#allocation2 + $0x98] sm:$0xff]
    %v69 = vld [vmem:[#allocation2 + $0xa0] sm:$0xff]
    %v70 = vld [vmem:[#allocation2 + $0xa8] sm:$0xff]
    %v71 = vld [vmem:[#allocation2 + $0xb0] sm:$0xff]
    %v72 = vld [vmem:[#allocation2 + $0xb8] sm:$0xff]
    %v73 = vld [vmem:[#allocation2 + $0xc0] sm:$0xff]
    %v74 = vld [vmem:[#allocation2 + $0xc8] sm:$0xff]
    %v75 = vld [vmem:[#allocation2 + $0xd0] sm:$0xff]
    %v76 = vld [vmem:[#allocation2 + $0xd8] sm:$0xff]
    %v77 = vld [vmem:[#allocation2 + $0xe0] sm:$0xff]
    %v78 = vld [vmem:[#allocation2 + $0xe8] sm:$0xff]
    %v79 = vld [vmem:[#allocation2 + $0xf0] sm:$0xff]
    %v80 = vld [vmem:[#allocation2 + $0xf8] sm:$0xff]
    %v81 = vld [vmem:[#allocation2 + $0x100] sm:$0xff]
    %v82 = vld [vmem:[#allocation2 + $0x108] sm:$0xff]
    %v83 = vld [vmem:[#allocation2 + $0x110] sm:$0xff]
    %v84 = vld [vmem:[#allocation2 + $0x118] sm:$0xff]
    %v85 = vld [vmem:[#allocation2 + $0x120] sm:$0xff]
    %v86 = vld [vmem:[#allocation2 + $0x128] sm:$0xff]
    %v87 = vld [vmem:[#allocation2 + $0x130] sm:$0xff]
    %v88 = vld [vmem:[#allocation2 + $0x138] sm:$0xff]
    %v89 = vld [vmem:[#allocation2 + $0x140] sm:$0xff]
    %v90 = vld [vmem:[#allocation2 + $0x148] sm:$0xff]
    %v91 = vld [vmem:[#allocation2 + $0x150] sm:$0xff]
    %v92 = vld [vmem:[#allocation2 + $0x158] sm:$0xff]
    %v93 = vld [vmem:[#allocation2 + $0x160] sm:$0xff]
    %v94 = vld [vmem:[#allocation2 + $0x168] sm:$0xff]
    %v95 = vld [vmem:[#allocation2 + $0x170] sm:$0xff]
    %v96 = vld [vmem:[#allocation2 + $0x178] sm:$0xff]
    %v97 = vld [vmem:[#allocation2 + $0x180] sm:$0xf]
    %v98 = vld [vmem:[#allocation2 + $0x188] sm:$0xf]
    %v99 = vpack.c.bf16 %v51, %v49
    %v100 = vpack.c.bf16 %v52, %v50
    %v101 = vpack.c.bf16 %v55, %v53
    %v102 = vpack.c.bf16 %v56, %v54
    %v103 = vpack.c.bf16 %v59, %v57
    %v104 = vpack.c.bf16 %v60, %v58
    %v105 = vpack.c.bf16 %v63, %v61
    %v106 = vpack.c.bf16 %v64, %v62
    %v107 = vpack.c.bf16 %v67, %v65
    %v108 = vpack.c.bf16 %v68, %v66
    %v109 = vpack.c.bf16 %v71, %v69
    %v110 = vpack.c.bf16 %v72, %v70
    %v111 = vpack.c.bf16 %v75, %v73
    %v112 = vpack.c.bf16 %v76, %v74
    %v113 = vpack.c.bf16 %v79, %v77
    %v114 = vpack.c.bf16 %v80, %v78
    %v115 = vpack.c.bf16 %v83, %v81
    %v116 = vpack.c.bf16 %v84, %v82
    %v117 = vpack.c.bf16 %v87, %v85
    %v118 = vpack.c.bf16 %v88, %v86
    %v119 = vpack.c.bf16 %v91, %v89
    %v120 = vpack.c.bf16 %v92, %v90
    %v121 = vpack.c.bf16 %v95, %v93
    %v122 = vpack.c.bf16 %v96, %v94
    %v123 = vpack.c.bf16 %v97, %v97
    %v124 = vpack.c.bf16 %v98, %v98
    %v125 = vld [vmem:[%s1] sm:$0xf]
    %v126 = vld [vmem:[%s1 + $0x4] sm:$0xf]
    %v127 = vld [vmem:[%s1 + $0x8] sm:$0xf]
    %v128 = vld [vmem:[%s1 + $0xc] sm:$0xf]
    %v129 = vld [vmem:[%s1 + $0x10] sm:$0xf]
    %v130 = vld [vmem:[%s1 + $0x14] sm:$0xf]
    %v131 = vld [vmem:[%s1 + $0x18] sm:$0xf]
    %v132 = vld [vmem:[%s1 + $0x1c] sm:$0xf]
    %v133 = vld [vmem:[%s1 + $0x20] sm:$0xf]
    %v134 = vld [vmem:[%s1 + $0x24] sm:$0xf]
    %v135 = vld [vmem:[%s1 + $0x28] sm:$0xf]
    %v136 = vld [vmem:[%s1 + $0x2c] sm:$0xf]
    %v137 = vld [vmem:[%s1 + $0x30] sm:$0xf]
    %v138 = vld [vmem:[%s1 + $0x34] sm:$0xf]
    %v139 = vld [vmem:[%s1 + $0x38] sm:$0xf]
    %v140 = vld [vmem:[%s1 + $0x3c] sm:$0xf]
    %v141 = vld [vmem:[%s1 + $0x40] sm:$0xf]
    %v142 = vld [vmem:[%s1 + $0x44] sm:$0xf]
    %v143 = vld [vmem:[%s1 + $0x48] sm:$0xf]
    %v144 = vld [vmem:[%s1 + $0x4c] sm:$0xf]
    %v145 = vld [vmem:[%s1 + $0x50] sm:$0xf]
    %v146 = vld [vmem:[%s1 + $0x54] sm:$0xf]
    %v147 = vld [vmem:[%s1 + $0x58] sm:$0xf]
    %v148 = vld [vmem:[%s1 + $0x5c] sm:$0xf]
    %v149 = vld [vmem:[%s1 + $0x60] sm:$0xf]
    %v150 = vld [vmem:[%s1 + $0x64] sm:$0xf]
    %v151 = vld [vmem:[%s1 + $0x68] sm:$0xf]
    %v152 = vld [vmem:[%s1 + $0x6c] sm:$0xf]
    %v153 = vld [vmem:[%s1 + $0x70] sm:$0xf]
    %v154 = vld [vmem:[%s1 + $0x74] sm:$0xf]
    %v155 = vld [vmem:[%s1 + $0x78] sm:$0xf]
    %v156 = vld [vmem:[%s1 + $0x7c] sm:$0xf]
    %v189 = vunpack.c.l.b16 %v125
    %v190 = vunpack.c.l.b16 %v126
    %v191 = vunpack.c.l.b16 %v127
    %v192 = vunpack.c.l.b16 %v128
    %v193 = vunpack.c.l.b16 %v129
    %v194 = vunpack.c.l.b16 %v130
    %v195 = vunpack.c.l.b16 %v131
    %v196 = vunpack.c.l.b16 %v132
    %v197 = vunpack.c.l.b16 %v133
    %v198 = vunpack.c.l.b16 %v134
    %v199 = vunpack.c.l.b16 %v135
    %v200 = vunpack.c.l.b16 %v136
    %v201 = vunpack.c.l.b16 %v137
    %v202 = vunpack.c.l.b16 %v138
    %v203 = vunpack.c.l.b16 %v139
    %v204 = vunpack.c.l.b16 %v140
    %v205 = vunpack.c.l.b16 %v141
    %v206 = vunpack.c.l.b16 %v142
    %v207 = vunpack.c.l.b16 %v143
    %v208 = vunpack.c.l.b16 %v144
    %v209 = vunpack.c.l.b16 %v145
    %v210 = vunpack.c.l.b16 %v146
    %v211 = vunpack.c.l.b16 %v147
    %v212 = vunpack.c.l.b16 %v148
    %v213 = vunpack.c.l.b16 %v149
    %v214 = vunpack.c.l.b16 %v150
    %v215 = vunpack.c.l.b16 %v151
    %v216 = vunpack.c.l.b16 %v152
    %v217 = vunpack.c.l.b16 %v153
    %v218 = vunpack.c.l.b16 %v154
    %v219 = vunpack.c.l.b16 %v155
    %v220 = vunpack.c.l.b16 %v156
    %v221 = vpack.c.b16 %v190, %v189
    %v222 = vpack.c.b16 %v192, %v191
    %v223 = vpack.c.b16 %v194, %v193
    %v224 = vpack.c.b16 %v196, %v195
    %v225 = vpack.c.b16 %v198, %v197
    %v226 = vpack.c.b16 %v200, %v199
    %v227 = vpack.c.b16 %v202, %v201
    %v228 = vpack.c.b16 %v204, %v203
    %v229 = vpack.c.b16 %v206, %v205
    %v230 = vpack.c.b16 %v208, %v207
    %v231 = vpack.c.b16 %v210, %v209
    %v232 = vpack.c.b16 %v212, %v211
    %v233 = vpack.c.b16 %v214, %v213
    %v234 = vpack.c.b16 %v216, %v215
    %v235 = vpack.c.b16 %v218, %v217
    %v236 = vpack.c.b16 %v220, %v219
    %253 = vmatpush.bf16.msra.mxu0 %v228
    %254 = vmatpush.bf16.msra.mxu0 %v227
    %255 = vmatpush.bf16.msra.mxu0 %v226
    %256 = vmatpush.bf16.msra.mxu0 %v225
    %257 = vmatpush.bf16.msra.mxu0 %v224
    %258 = vmatpush.bf16.msra.mxu0 %v223
    %259 = vmatpush.bf16.msra.mxu0 %v222
    %260 = vmatpush.bf16.msra.mxu0 %v221
    %261 = vmatmul.bf16.gmra.mxu0 %v99
    %v262 = vpop.f32.mrf.mxu0
    %v263 = vadd.f32 0.0, %v262
    %v264 = vpop.f32.mrf.mxu0
    %v265 = vadd.f32 0.0, %v264
    %266 = vmatmul.bf16.gmra.mxu0 %v101
    %v267 = vpop.f32.mrf.mxu0
    %v268 = vadd.f32 0.0, %v267
    %v269 = vpop.f32.mrf.mxu0
    %v270 = vadd.f32 0.0, %v269
    %271 = vmatmul.bf16.gmra.mxu0 %v103
    %v272 = vpop.f32.mrf.mxu0
    %v273 = vadd.f32 0.0, %v272
    %v274 = vpop.f32.mrf.mxu0
    %v275 = vadd.f32 0.0, %v274
    %276 = vmatmul.bf16.gmra.mxu0 %v105
    %v277 = vpop.f32.mrf.mxu0
    %v278 = vadd.f32 0.0, %v277
    %v279 = vpop.f32.mrf.mxu0
    %v280 = vadd.f32 0.0, %v279
    %281 = vmatmul.bf16.gmra.mxu0 %v107
    %v282 = vpop.f32.mrf.mxu0
    %v283 = vadd.f32 0.0, %v282
    %v284 = vpop.f32.mrf.mxu0
    %v285 = vadd.f32 0.0, %v284
    %286 = vmatmul.bf16.gmra.mxu0 %v109
    %v287 = vpop.f32.mrf.mxu0
    %v288 = vadd.f32 0.0, %v287
    %v289 = vpop.f32.mrf.mxu0
    %v290 = vadd.f32 0.0, %v289
    %291 = vmatmul.bf16.gmra.mxu0 %v111
    %v292 = vpop.f32.mrf.mxu0
    %v293 = vadd.f32 0.0, %v292
    %v294 = vpop.f32.mrf.mxu0
    %v295 = vadd.f32 0.0, %v294
    %296 = vmatmul.bf16.gmra.mxu0 %v113
    %v297 = vpop.f32.mrf.mxu0
    %v298 = vadd.f32 0.0, %v297
    %v299 = vpop.f32.mrf.mxu0
    %v300 = vadd.f32 0.0, %v299
    %301 = vmatmul.bf16.gmra.mxu0 %v115
    %v302 = vpop.f32.mrf.mxu0
    %v303 = vadd.f32 0.0, %v302
    %v304 = vpop.f32.mrf.mxu0
    %v305 = vadd.f32 0.0, %v304
    %306 = vmatmul.bf16.gmra.mxu0 %v117
    %v307 = vpop.f32.mrf.mxu0
    %v308 = vadd.f32 0.0, %v307
    %v309 = vpop.f32.mrf.mxu0
    %v310 = vadd.f32 0.0, %v309
    %311 = vmatmul.bf16.gmra.mxu0 %v119
    %v312 = vpop.f32.mrf.mxu0
    %v313 = vadd.f32 0.0, %v312
    %v314 = vpop.f32.mrf.mxu0
    %v315 = vadd.f32 0.0, %v314
    %316 = vmatmul.bf16.gmra.mxu0 %v121
    %v317 = vpop.f32.mrf.mxu0
    %v318 = vadd.f32 0.0, %v317
    %v319 = vpop.f32.mrf.mxu0
    %v320 = vadd.f32 0.0, %v319
    %321 = vmatmul.bf16.gmra.mxu0 %v123
    %v322 = vpop.f32.mrf.mxu0
    %v323 = vadd.f32 0.0, %v322
    %v324 = vpop.f32.mrf.mxu0
    %325 = vdwg.mxu0
    %326 = vmatpush.bf16.msra.mxu0 %v236
    %327 = vmatpush.bf16.msra.mxu0 %v235
    %328 = vmatpush.bf16.msra.mxu0 %v234
    %329 = vmatpush.bf16.msra.mxu0 %v233
    %330 = vmatpush.bf16.msra.mxu0 %v232
    %331 = vmatpush.bf16.msra.mxu0 %v231
    %332 = vmatpush.bf16.msra.mxu0 %v230
    %333 = vmatpush.bf16.msra.mxu0 %v229
    %334 = vmatmul.bf16.gmra.mxu0 %v100
    %v335 = vpop.f32.mrf.mxu0
    %v336 = vadd.f32 %v263, %v335
    %v337 = vpop.f32.mrf.mxu0
    %v338 = vadd.f32 %v265, %v337
    %339 = vmatmul.bf16.gmra.mxu0 %v102
    %v340 = vpop.f32.mrf.mxu0
    %v341 = vadd.f32 %v268, %v340
    %v342 = vpop.f32.mrf.mxu0
    %v343 = vadd.f32 %v270, %v342
    %344 = vmatmul.bf16.gmra.mxu0 %v104
    %v345 = vpop.f32.mrf.mxu0
    %v346 = vadd.f32 %v273, %v345
    %v347 = vpop.f32.mrf.mxu0
    %v348 = vadd.f32 %v275, %v347
    %349 = vmatmul.bf16.gmra.mxu0 %v106
    %v350 = vpop.f32.mrf.mxu0
    %v351 = vadd.f32 %v278, %v350
    %v352 = vpop.f32.mrf.mxu0
    %v353 = vadd.f32 %v280, %v352
    %354 = vmatmul.bf16.gmra.mxu0 %v108
    %v355 = vpop.f32.mrf.mxu0
    %v356 = vadd.f32 %v283, %v355
    %v357 = vpop.f32.mrf.mxu0
    %v358 = vadd.f32 %v285, %v357
    %359 = vmatmul.bf16.gmra.mxu0 %v110
    %v360 = vpop.f32.mrf.mxu0
    %v361 = vadd.f32 %v288, %v360
    %v362 = vpop.f32.mrf.mxu0
    %v363 = vadd.f32 %v290, %v362
    %364 = vmatmul.bf16.gmra.mxu0 %v112
    %v365 = vpop.f32.mrf.mxu0
    %v366 = vadd.f32 %v293, %v365
    %v367 = vpop.f32.mrf.mxu0
    %v368 = vadd.f32 %v295, %v367
    %369 = vmatmul.bf16.gmra.mxu0 %v114
    %v370 = vpop.f32.mrf.mxu0
    %v371 = vadd.f32 %v298, %v370
    %v372 = vpop.f32.mrf.mxu0
    %v373 = vadd.f32 %v300, %v372
    %374 = vmatmul.bf16.gmra.mxu0 %v116
    %v375 = vpop.f32.mrf.mxu0
    %v376 = vadd.f32 %v303, %v375
    %v377 = vpop.f32.mrf.mxu0
    %v378 = vadd.f32 %v305, %v377
    %379 = vmatmul.bf16.gmra.mxu0 %v118
    %v380 = vpop.f32.mrf.mxu0
    %v381 = vadd.f32 %v308, %v380
    %v382 = vpop.f32.mrf.mxu0
    %v383 = vadd.f32 %v310, %v382
    %384 = vmatmul.bf16.gmra.mxu0 %v120
    %v385 = vpop.f32.mrf.mxu0
    %v386 = vadd.f32 %v313, %v385
    %v387 = vpop.f32.mrf.mxu0
    %v388 = vadd.f32 %v315, %v387
    %389 = vmatmul.bf16.gmra.mxu0 %v122
    %v390 = vpop.f32.mrf.mxu0
    %v391 = vadd.f32 %v318, %v390
    %v392 = vpop.f32.mrf.mxu0
    %v393 = vadd.f32 %v320, %v392
    %394 = vmatmul.bf16.gmra.mxu0 %v124
    %v395 = vpop.f32.mrf.mxu0
    %v396 = vadd.f32 %v323, %v395
    %v397 = vpop.f32.mrf.mxu0
    %398 = vdwg.mxu0
    %v399 = vld [vmem:[#allocation4] sm:$0xff]
    %v400 = vld [vmem:[#allocation4 + $0x8] sm:$0xff]
    %v401 = vld [vmem:[#allocation4 + $0x10] sm:$0xff]
    %v402 = vld [vmem:[#allocation4 + $0x18] sm:$0xff]
    %v403 = vld [vmem:[#allocation4 + $0x20] sm:$0xff]
    %v404 = vld [vmem:[#allocation4 + $0x28] sm:$0xff]
    %v405 = vld [vmem:[#allocation4 + $0x30] sm:$0xff]
    %v406 = vld [vmem:[#allocation4 + $0x38] sm:$0xff]
    %v407 = vld [vmem:[#allocation4 + $0x40] sm:$0xff]
    %v408 = vld [vmem:[#allocation4 + $0x48] sm:$0xff]
    %v409 = vld [vmem:[#allocation4 + $0x50] sm:$0xff]
    %v410 = vld [vmem:[#allocation4 + $0x58] sm:$0xff]
    %v411 = vld [vmem:[#allocation4 + $0x60] sm:$0xff]
    %v412 = vld [vmem:[#allocation4 + $0x68] sm:$0xff]
    %v413 = vld [vmem:[#allocation4 + $0x70] sm:$0xff]
    %v414 = vld [vmem:[#allocation4 + $0x78] sm:$0xff]
    %v415 = vld [vmem:[#allocation4 + $0x80] sm:$0xff]
    %v416 = vld [vmem:[#allocation4 + $0x88] sm:$0xff]
    %v417 = vld [vmem:[#allocation4 + $0x90] sm:$0xff]
    %v418 = vld [vmem:[#allocation4 + $0x98] sm:$0xff]
    %v419 = vld [vmem:[#allocation4 + $0xa0] sm:$0xff]
    %v420 = vld [vmem:[#allocation4 + $0xa8] sm:$0xff]
    %v421 = vld [vmem:[#allocation4 + $0xb0] sm:$0xff]
    %v422 = vld [vmem:[#allocation4 + $0xb8] sm:$0xff]
    %v423 = vld [vmem:[#allocation4 + $0xc0] sm:$0xff]
    %v424 = vld [vmem:[#allocation4 + $0xc8] sm:$0xff]
    %v425 = vld [vmem:[#allocation4 + $0xd0] sm:$0xff]
    %v426 = vld [vmem:[#allocation4 + $0xd8] sm:$0xff]
    %v427 = vld [vmem:[#allocation4 + $0xe0] sm:$0xff]
    %v428 = vld [vmem:[#allocation4 + $0xe8] sm:$0xff]
    %v429 = vld [vmem:[#allocation4 + $0xf0] sm:$0xff]
    %v430 = vld [vmem:[#allocation4 + $0xf8] sm:$0xff]
    %v431 = vld [vmem:[#allocation4 + $0x100] sm:$0xff]
    %v432 = vld [vmem:[#allocation4 + $0x108] sm:$0xff]
    %v433 = vld [vmem:[#allocation4 + $0x110] sm:$0xff]
    %v434 = vld [vmem:[#allocation4 + $0x118] sm:$0xff]
    %v435 = vld [vmem:[#allocation4 + $0x120] sm:$0xff]
    %v436 = vld [vmem:[#allocation4 + $0x128] sm:$0xff]
    %v437 = vld [vmem:[#allocation4 + $0x130] sm:$0xff]
    %v438 = vld [vmem:[#allocation4 + $0x138] sm:$0xff]
    %v439 = vld [vmem:[#allocation4 + $0x140] sm:$0xff]
    %v440 = vld [vmem:[#allocation4 + $0x148] sm:$0xff]
    %v441 = vld [vmem:[#allocation4 + $0x150] sm:$0xff]
    %v442 = vld [vmem:[#allocation4 + $0x158] sm:$0xff]
    %v443 = vld [vmem:[#allocation4 + $0x160] sm:$0xff]
    %v444 = vld [vmem:[#allocation4 + $0x168] sm:$0xff]
    %v445 = vld [vmem:[#allocation4 + $0x170] sm:$0xff]
    %v446 = vld [vmem:[#allocation4 + $0x178] sm:$0xff]
    %v447 = vld [vmem:[#allocation4 + $0x180] sm:$0xf]
    %v448 = vld [vmem:[#allocation4 + $0x188] sm:$0xf]
    %v449 = vld [vmem:[%s3] sm:$0xff]
    %v450 = vld [vmem:[%s3 + $0x8] sm:$0xff]
    %v451 = vld [vmem:[%s3 + $0x10] sm:$0xff]
    %v452 = vld [vmem:[%s3 + $0x18] sm:$0xff]
    %v453 = vld [vmem:[%s3 + $0x20] sm:$0xff]
    %v454 = vld [vmem:[%s3 + $0x28] sm:$0xff]
    %v455 = vld [vmem:[%s3 + $0x30] sm:$0xff]
    %v456 = vld [vmem:[%s3 + $0x38] sm:$0xff]
    %v457 = vld [vmem:[%s3 + $0x40] sm:$0xff]
    %v458 = vld [vmem:[%s3 + $0x48] sm:$0xff]
    %v459 = vld [vmem:[%s3 + $0x50] sm:$0xff]
    %v460 = vld [vmem:[%s3 + $0x58] sm:$0xff]
    %v461 = vld [vmem:[%s3 + $0x60] sm:$0xff]
    %v462 = vld [vmem:[%s3 + $0x68] sm:$0xff]
    %v463 = vld [vmem:[%s3 + $0x70] sm:$0xff]
    %v464 = vld [vmem:[%s3 + $0x78] sm:$0xff]
    %466 = vset.pattern.permute.xlu0 0
    %467 = vperm.xlu0 %466, %v449
    %v468 = vpop.permute.xlu0 %467
    %471 = vset.pattern.permute.xlu0 0
    %472 = vperm.xlu0 %471, %v450
    %v473 = vpop.permute.xlu0 %472
    %476 = vset.pattern.permute.xlu0 0
    %477 = vperm.xlu0 %476, %v451
    %v478 = vpop.permute.xlu0 %477
    %481 = vset.pattern.permute.xlu0 0
    %482 = vperm.xlu0 %481, %v452
    %v483 = vpop.permute.xlu0 %482
    %486 = vset.pattern.permute.xlu0 0
    %487 = vperm.xlu0 %486, %v453
    %v488 = vpop.permute.xlu0 %487
    %491 = vset.pattern.permute.xlu0 0
    %492 = vperm.xlu0 %491, %v454
    %v493 = vpop.permute.xlu0 %492
    %496 = vset.pattern.permute.xlu0 0
    %497 = vperm.xlu0 %496, %v455
    %v498 = vpop.permute.xlu0 %497
    %501 = vset.pattern.permute.xlu0 0
    %502 = vperm.xlu0 %501, %v456
    %v503 = vpop.permute.xlu0 %502
    %506 = vset.pattern.permute.xlu0 0
    %507 = vperm.xlu0 %506, %v457
    %v508 = vpop.permute.xlu0 %507
    %511 = vset.pattern.permute.xlu0 0
    %512 = vperm.xlu0 %511, %v458
    %v513 = vpop.permute.xlu0 %512
    %516 = vset.pattern.permute.xlu0 0
    %517 = vperm.xlu0 %516, %v459
    %v518 = vpop.permute.xlu0 %517
    %521 = vset.pattern.permute.xlu0 0
    %522 = vperm.xlu0 %521, %v460
    %v523 = vpop.permute.xlu0 %522
    %526 = vset.pattern.permute.xlu0 0
    %527 = vperm.xlu0 %526, %v461
    %v528 = vpop.permute.xlu0 %527
    %531 = vset.pattern.permute.xlu0 0
    %532 = vperm.xlu0 %531, %v462
    %v533 = vpop.permute.xlu0 %532
    %536 = vset.pattern.permute.xlu0 0
    %537 = vperm.xlu0 %536, %v463
    %v538 = vpop.permute.xlu0 %537
    %541 = vset.pattern.permute.xlu0 0
    %542 = vperm.xlu0 %541, %v464
    %v543 = vpop.permute.xlu0 %542
    %545 = vxpose.xlu0.b32.start [1/16] %v336, 128
    %546 = vxpose.xlu0.b32.cont [2/16] %v338, 128
    %547 = vxpose.xlu0.b32.cont [3/16] %v341, 128
    %548 = vxpose.xlu0.b32.cont [4/16] %v343, 128
    %549 = vxpose.xlu0.b32.cont [5/16] %v346, 128
    %550 = vxpose.xlu0.b32.cont [6/16] %v348, 128
    %551 = vxpose.xlu0.b32.cont [7/16] %v351, 128
    %552 = vxpose.xlu0.b32.cont [8/16] %v353, 128
    %553 = vxpose.xlu0.b32.cont [9/16] %v356, 128
    %554 = vxpose.xlu0.b32.cont [10/16] %v358, 128
    %555 = vxpose.xlu0.b32.cont [11/16] %v361, 128
    %556 = vxpose.xlu0.b32.cont [12/16] %v363, 128
    %557 = vxpose.xlu0.b32.cont [13/16] %v366, 128
    %558 = vxpose.xlu0.b32.cont [14/16] %v368, 128
    %559 = vxpose.xlu0.b32.cont [15/16] %v371, 128
    %560 = vxpose.xlu0.b32.end [16/16] %v373, 128
    %v561 = vpop.trf.xlu0
    %v562 = vpop.trf.xlu0
    %v563 = vpop.trf.xlu0
    %v564 = vpop.trf.xlu0
    %v565 = vpop.trf.xlu0
    %v566 = vpop.trf.xlu0
    %v567 = vpop.trf.xlu0
    %v568 = vpop.trf.xlu0
    %v569 = vpop.trf.xlu0
    %v570 = vpop.trf.xlu0
    %v571 = vpop.trf.xlu0
    %v572 = vpop.trf.xlu0
    %v573 = vpop.trf.xlu0
    %v574 = vpop.trf.xlu0
    %v575 = vpop.trf.xlu0
    %v576 = vpop.trf.xlu0
    %577 = vxpose.xlu0.b32.start [1/16] %v376, 128
    %578 = vxpose.xlu0.b32.cont [2/16] %v378, 128
    %579 = vxpose.xlu0.b32.cont [3/16] %v381, 128
    %580 = vxpose.xlu0.b32.cont [4/16] %v383, 128
    %581 = vxpose.xlu0.b32.cont [5/16] %v386, 128
    %582 = vxpose.xlu0.b32.cont [6/16] %v388, 128
    %583 = vxpose.xlu0.b32.cont [7/16] %v391, 128
    %584 = vxpose.xlu0.b32.cont [8/16] %v393, 128
    %585 = vxpose.xlu0.b32.cont [9/16] %v396, 128
    %586 = vxpose.xlu0.b32.cont [10/16] 0.0, 128
    %587 = vxpose.xlu0.b32.cont [11/16] 0.0, 128
    %588 = vxpose.xlu0.b32.cont [12/16] 0.0, 128
    %589 = vxpose.xlu0.b32.cont [13/16] 0.0, 128
    %590 = vxpose.xlu0.b32.cont [14/16] 0.0, 128
    %591 = vxpose.xlu0.b32.cont [15/16] 0.0, 128
    %592 = vxpose.xlu0.b32.end [16/16] 0.0, 128
    %v593 = vpop.trf.xlu0
    %v594 = vpop.trf.xlu0
    %v595 = vpop.trf.xlu0
    %v596 = vpop.trf.xlu0
    %v597 = vpop.trf.xlu0
    %v598 = vpop.trf.xlu0
    %v599 = vpop.trf.xlu0
    %v600 = vpop.trf.xlu0
    %v601 = vpop.trf.xlu0
    %v602 = vpop.trf.xlu0
    %v603 = vpop.trf.xlu0
    %v604 = vpop.trf.xlu0
    %v605 = vpop.trf.xlu0
    %v606 = vpop.trf.xlu0
    %v607 = vpop.trf.xlu0
    %v608 = vpop.trf.xlu0
    %vm609 = vcmask 556032
    %v611 = vsel %vm609, %v593, 0
    %v614 = vsel %vm609, %v594, 0
    %v617 = vsel %vm609, %v595, 0
    %v620 = vsel %vm609, %v596, 0
    %v623 = vsel %vm609, %v597, 0
    %v626 = vsel %vm609, %v598, 0
    %v629 = vsel %vm609, %v599, 0
    %v632 = vsel %vm609, %v600, 0
    %v635 = vsel %vm609, %v601, 0
    %v638 = vsel %vm609, %v602, 0
    %v641 = vsel %vm609, %v603, 0
    %v644 = vsel %vm609, %v604, 0
    %v647 = vsel %vm609, %v605, 0
    %v650 = vsel %vm609, %v606, 0
    %v653 = vsel %vm609, %v607, 0
    %v656 = vsel %vm609, %v608, 0
    %vm658 = vcmask 1043456
    %v660 = vsel %vm658, %v447, 0
    %v663 = vsel %vm658, %v448, 0
    %665 = vmatpush.msra.mxu0 %v429
    %666 = vmatpush.msra.mxu0 %v427
    %667 = vmatpush.msra.mxu0 %v425
    %668 = vmatpush.msra.mxu0 %v423
    %669 = vmatpush.msra.mxu0 %v421
    %670 = vmatpush.msra.mxu0 %v419
    %671 = vmatpush.msra.mxu0 %v417
    %672 = vmatpush.msra.mxu0 %v415
    %673 = vmatpush.msra.mxu0 %v413
    %674 = vmatpush.msra.mxu0 %v411
    %675 = vmatpush.msra.mxu0 %v409
    %676 = vmatpush.msra.mxu0 %v407
    %677 = vmatpush.msra.mxu0 %v405
    %678 = vmatpush.msra.mxu0 %v403
    %679 = vmatpush.msra.mxu0 %v401
    %680 = vmatpush.msra.mxu0 %v399
    %681 = vmatmul.f32.gmra.mxu0 %v561
    %v682 = vpop.f32.mrf.mxu0
    %v683 = vadd.f32 %v468, %v682
    %684 = vmatmul.f32.gmra.mxu0 %v562
    %v685 = vpop.f32.mrf.mxu0
    %v686 = vadd.f32 %v473, %v685
    %687 = vmatmul.f32.gmra.mxu0 %v563
    %v688 = vpop.f32.mrf.mxu0
    %v689 = vadd.f32 %v478, %v688
    %690 = vmatmul.f32.gmra.mxu0 %v564
    %v691 = vpop.f32.mrf.mxu0
    %v692 = vadd.f32 %v483, %v691
    %693 = vmatmul.f32.gmra.mxu0 %v565
    %v694 = vpop.f32.mrf.mxu0
    %v695 = vadd.f32 %v488, %v694
    %696 = vmatmul.f32.gmra.mxu0 %v566
    %v697 = vpop.f32.mrf.mxu0
    %v698 = vadd.f32 %v493, %v697
    %699 = vmatmul.f32.gmra.mxu0 %v567
    %v700 = vpop.f32.mrf.mxu0
    %v701 = vadd.f32 %v498, %v700
    %702 = vmatmul.f32.gmra.mxu0 %v568
    %v703 = vpop.f32.mrf.mxu0
    %v704 = vadd.f32 %v503, %v703
    %705 = vmatmul.f32.gmra.mxu0 %v569
    %v706 = vpop.f32.mrf.mxu0
    %v707 = vadd.f32 %v508, %v706
    %708 = vmatmul.f32.gmra.mxu0 %v570
    %v709 = vpop.f32.mrf.mxu0
    %v710 = vadd.f32 %v513, %v709
    %711 = vmatmul.f32.gmra.mxu0 %v571
    %v712 = vpop.f32.mrf.mxu0
    %v713 = vadd.f32 %v518, %v712
    %714 = vmatmul.f32.gmra.mxu0 %v572
    %v715 = vpop.f32.mrf.mxu0
    %v716 = vadd.f32 %v523, %v715
    %717 = vmatmul.f32.gmra.mxu0 %v573
    %v718 = vpop.f32.mrf.mxu0
    %v719 = vadd.f32 %v528, %v718
    %720 = vmatmul.f32.gmra.mxu0 %v574
    %v721 = vpop.f32.mrf.mxu0
    %v722 = vadd.f32 %v533, %v721
    %723 = vmatmul.f32.gmra.mxu0 %v575
    %v724 = vpop.f32.mrf.mxu0
    %v725 = vadd.f32 %v538, %v724
    %726 = vmatmul.f32.gmra.mxu0 %v576
    %v727 = vpop.f32.mrf.mxu0
    %v728 = vadd.f32 %v543, %v727
    %729 = vdwg.mxu0
    %730 = vmatpush.msra.mxu0 0.0
    %731 = vmatpush.msra.mxu0 0.0
    %732 = vmatpush.msra.mxu0 0.0
    %733 = vmatpush.msra.mxu0 0.0
    %734 = vmatpush.msra.mxu0 0.0
    %735 = vmatpush.msra.mxu0 0.0
    %736 = vmatpush.msra.mxu0 0.0
    %737 = vmatpush.msra.mxu0 %v660
    %738 = vmatpush.msra.mxu0 %v445
    %739 = vmatpush.msra.mxu0 %v443
    %740 = vmatpush.msra.mxu0 %v441
    %741 = vmatpush.msra.mxu0 %v439
    %742 = vmatpush.msra.mxu0 %v437
    %743 = vmatpush.msra.mxu0 %v435
    %744 = vmatpush.msra.mxu0 %v433
    %745 = vmatpush.msra.mxu0 %v431
    %746 = vmatmul.f32.gmra.mxu0 %v611
    %v747 = vpop.f32.mrf.mxu0
    %v748 = vadd.f32 %v683, %v747
    %749 = vmatmul.f32.gmra.mxu0 %v614
    %v750 = vpop.f32.mrf.mxu0
    %v751 = vadd.f32 %v686, %v750
    %752 = vmatmul.f32.gmra.mxu0 %v617
    %v753 = vpop.f32.mrf.mxu0
    %v754 = vadd.f32 %v689, %v753
    %755 = vmatmul.f32.gmra.mxu0 %v620
    %v756 = vpop.f32.mrf.mxu0
    %v757 = vadd.f32 %v692, %v756
    %758 = vmatmul.f32.gmra.mxu0 %v623
    %v759 = vpop.f32.mrf.mxu0
    %v760 = vadd.f32 %v695, %v759
    %761 = vmatmul.f32.gmra.mxu0 %v626
    %v762 = vpop.f32.mrf.mxu0
    %v763 = vadd.f32 %v698, %v762
    %764 = vmatmul.f32.gmra.mxu0 %v629
    %v765 = vpop.f32.mrf.mxu0
    %v766 = vadd.f32 %v701, %v765
    %767 = vmatmul.f32.gmra.mxu0 %v632
    %v768 = vpop.f32.mrf.mxu0
    %v769 = vadd.f32 %v704, %v768
    %770 = vmatmul.f32.gmra.mxu0 %v635
    %v771 = vpop.f32.mrf.mxu0
    %v772 = vadd.f32 %v707, %v771
    %773 = vmatmul.f32.gmra.mxu0 %v638
    %v774 = vpop.f32.mrf.mxu0
    %v775 = vadd.f32 %v710, %v774
    %776 = vmatmul.f32.gmra.mxu0 %v641
    %v777 = vpop.f32.mrf.mxu0
    %v778 = vadd.f32 %v713, %v777
    %779 = vmatmul.f32.gmra.mxu0 %v644
    %v780 = vpop.f32.mrf.mxu0
    %v781 = vadd.f32 %v716, %v780
    %782 = vmatmul.f32.gmra.mxu0 %v647
    %v783 = vpop.f32.mrf.mxu0
    %v784 = vadd.f32 %v719, %v783
    %785 = vmatmul.f32.gmra.mxu0 %v650
    %v786 = vpop.f32.mrf.mxu0
    %v787 = vadd.f32 %v722, %v786
    %788 = vmatmul.f32.gmra.mxu0 %v653
    %v789 = vpop.f32.mrf.mxu0
    %v790 = vadd.f32 %v725, %v789
    %791 = vmatmul.f32.gmra.mxu0 %v656
    %v792 = vpop.f32.mrf.mxu0
    %v793 = vadd.f32 %v728, %v792
    %794 = vdwg.mxu0
    %795 = vmatpush.msra.mxu0 %v430
    %796 = vmatpush.msra.mxu0 %v428
    %797 = vmatpush.msra.mxu0 %v426
    %798 = vmatpush.msra.mxu0 %v424
    %799 = vmatpush.msra.mxu0 %v422
    %800 = vmatpush.msra.mxu0 %v420
    %801 = vmatpush.msra.mxu0 %v418
    %802 = vmatpush.msra.mxu0 %v416
    %803 = vmatpush.msra.mxu0 %v414
    %804 = vmatpush.msra.mxu0 %v412
    %805 = vmatpush.msra.mxu0 %v410
    %806 = vmatpush.msra.mxu0 %v408
    %807 = vmatpush.msra.mxu0 %v406
    %808 = vmatpush.msra.mxu0 %v404
    %809 = vmatpush.msra.mxu0 %v402
    %810 = vmatpush.msra.mxu0 %v400
    %811 = vmatmul.f32.gmra.mxu0 %v561
    %v812 = vpop.f32.mrf.mxu0
    %v813 = vadd.f32 %v468, %v812
    %814 = vmatmul.f32.gmra.mxu0 %v562
    %v815 = vpop.f32.mrf.mxu0
    %v816 = vadd.f32 %v473, %v815
    %817 = vmatmul.f32.gmra.mxu0 %v563
    %v818 = vpop.f32.mrf.mxu0
    %v819 = vadd.f32 %v478, %v818
    %820 = vmatmul.f32.gmra.mxu0 %v564
    %v821 = vpop.f32.mrf.mxu0
    %v822 = vadd.f32 %v483, %v821
    %823 = vmatmul.f32.gmra.mxu0 %v565
    %v824 = vpop.f32.mrf.mxu0
    %v825 = vadd.f32 %v488, %v824
    %826 = vmatmul.f32.gmra.mxu0 %v566
    %v827 = vpop.f32.mrf.mxu0
    %v828 = vadd.f32 %v493, %v827
    %829 = vmatmul.f32.gmra.mxu0 %v567
    %v830 = vpop.f32.mrf.mxu0
    %v831 = vadd.f32 %v498, %v830
    %832 = vmatmul.f32.gmra.mxu0 %v568
    %v833 = vpop.f32.mrf.mxu0
    %v834 = vadd.f32 %v503, %v833
    %835 = vmatmul.f32.gmra.mxu0 %v569
    %v836 = vpop.f32.mrf.mxu0
    %v837 = vadd.f32 %v508, %v836
    %838 = vmatmul.f32.gmra.mxu0 %v570
    %v839 = vpop.f32.mrf.mxu0
    %v840 = vadd.f32 %v513, %v839
    %841 = vmatmul.f32.gmra.mxu0 %v571
    %v842 = vpop.f32.mrf.mxu0
    %v843 = vadd.f32 %v518, %v842
    %844 = vmatmul.f32.gmra.mxu0 %v572
    %v845 = vpop.f32.mrf.mxu0
    %v846 = vadd.f32 %v523, %v845
    %847 = vmatmul.f32.gmra.mxu0 %v573
    %v848 = vpop.f32.mrf.mxu0
    %v849 = vadd.f32 %v528, %v848
    %850 = vmatmul.f32.gmra.mxu0 %v574
    %v851 = vpop.f32.mrf.mxu0
    %v852 = vadd.f32 %v533, %v851
    %853 = vmatmul.f32.gmra.mxu0 %v575
    %v854 = vpop.f32.mrf.mxu0
    %v855 = vadd.f32 %v538, %v854
    %856 = vmatmul.f32.gmra.mxu0 %v576
    %v857 = vpop.f32.mrf.mxu0
    %v858 = vadd.f32 %v543, %v857
    %859 = vdwg.mxu0
    %860 = vmatpush.msra.mxu0 0.0
    %861 = vmatpush.msra.mxu0 0.0
    %862 = vmatpush.msra.mxu0 0.0
    %863 = vmatpush.msra.mxu0 0.0
    %864 = vmatpush.msra.mxu0 0.0
    %865 = vmatpush.msra.mxu0 0.0
    %866 = vmatpush.msra.mxu0 0.0
    %867 = vmatpush.msra.mxu0 %v663
    %868 = vmatpush.msra.mxu0 %v446
    %869 = vmatpush.msra.mxu0 %v444
    %870 = vmatpush.msra.mxu0 %v442
    %871 = vmatpush.msra.mxu0 %v440
    %872 = vmatpush.msra.mxu0 %v438
    %873 = vmatpush.msra.mxu0 %v436
    %874 = vmatpush.msra.mxu0 %v434
    %875 = vmatpush.msra.mxu0 %v432
    %876 = vmatmul.f32.gmra.mxu0 %v611
    %v877 = vpop.f32.mrf.mxu0
    %v878 = vadd.f32 %v813, %v877
    %879 = vmatmul.f32.gmra.mxu0 %v614
    %v880 = vpop.f32.mrf.mxu0
    %v881 = vadd.f32 %v816, %v880
    %882 = vmatmul.f32.gmra.mxu0 %v617
    %v883 = vpop.f32.mrf.mxu0
    %v884 = vadd.f32 %v819, %v883
    %885 = vmatmul.f32.gmra.mxu0 %v620
    %v886 = vpop.f32.mrf.mxu0
    %v887 = vadd.f32 %v822, %v886
    %888 = vmatmul.f32.gmra.mxu0 %v623
    %v889 = vpop.f32.mrf.mxu0
    %v890 = vadd.f32 %v825, %v889
    %891 = vmatmul.f32.gmra.mxu0 %v626
    %v892 = vpop.f32.mrf.mxu0
    %v893 = vadd.f32 %v828, %v892
    %894 = vmatmul.f32.gmra.mxu0 %v629
    %v895 = vpop.f32.mrf.mxu0
    %v896 = vadd.f32 %v831, %v895
    %897 = vmatmul.f32.gmra.mxu0 %v632
    %v898 = vpop.f32.mrf.mxu0
    %v899 = vadd.f32 %v834, %v898
    %900 = vmatmul.f32.gmra.mxu0 %v635
    %v901 = vpop.f32.mrf.mxu0
    %v902 = vadd.f32 %v837, %v901
    %903 = vmatmul.f32.gmra.mxu0 %v638
    %v904 = vpop.f32.mrf.mxu0
    %v905 = vadd.f32 %v840, %v904
    %906 = vmatmul.f32.gmra.mxu0 %v641
    %v907 = vpop.f32.mrf.mxu0
    %v908 = vadd.f32 %v843, %v907
    %909 = vmatmul.f32.gmra.mxu0 %v644
    %v910 = vpop.f32.mrf.mxu0
    %v911 = vadd.f32 %v846, %v910
    %912 = vmatmul.f32.gmra.mxu0 %v647
    %v913 = vpop.f32.mrf.mxu0
    %v914 = vadd.f32 %v849, %v913
    %915 = vmatmul.f32.gmra.mxu0 %v650
    %v916 = vpop.f32.mrf.mxu0
    %v917 = vadd.f32 %v852, %v916
    %918 = vmatmul.f32.gmra.mxu0 %v653
    %v919 = vpop.f32.mrf.mxu0
    %v920 = vadd.f32 %v855, %v919
    %921 = vmatmul.f32.gmra.mxu0 %v656
    %v922 = vpop.f32.mrf.mxu0
    %v923 = vadd.f32 %v858, %v922
    %924 = vdwg.mxu0
    %925 = vst [vmem:[%s4] sm:$0xff] %v748
    %926 = vst.msk [vmem:[%s4 + $0x8] sm:$0xff] %vm609, %v878
    %927 = vst [vmem:[%s4 + $0x10] sm:$0xff] %v751
    %928 = vst.msk [vmem:[%s4 + $0x18] sm:$0xff] %vm609, %v881
    %929 = vst [vmem:[%s4 + $0x20] sm:$0xff] %v754
    %930 = vst.msk [vmem:[%s4 + $0x28] sm:$0xff] %vm609, %v884
    %931 = vst [vmem:[%s4 + $0x30] sm:$0xff] %v757
    %932 = vst.msk [vmem:[%s4 + $0x38] sm:$0xff] %vm609, %v887
    %933 = vst [vmem:[%s4 + $0x40] sm:$0xff] %v760
    %934 = vst.msk [vmem:[%s4 + $0x48] sm:$0xff] %vm609, %v890
    %935 = vst [vmem:[%s4 + $0x50] sm:$0xff] %v763
    %936 = vst.msk [vmem:[%s4 + $0x58] sm:$0xff] %vm609, %v893
    %937 = vst [vmem:[%s4 + $0x60] sm:$0xff] %v766
    %938 = vst.msk [vmem:[%s4 + $0x68] sm:$0xff] %vm609, %v896
    %939 = vst [vmem:[%s4 + $0x70] sm:$0xff] %v769
    %940 = vst.msk [vmem:[%s4 + $0x78] sm:$0xff] %vm609, %v899
    %941 = vst [vmem:[%s4 + $0x80] sm:$0xff] %v772
    %942 = vst.msk [vmem:[%s4 + $0x88] sm:$0xff] %vm609, %v902
    %943 = vst [vmem:[%s4 + $0x90] sm:$0xff] %v775
    %944 = vst.msk [vmem:[%s4 + $0x98] sm:$0xff] %vm609, %v905
    %945 = vst [vmem:[%s4 + $0xa0] sm:$0xff] %v778
    %946 = vst.msk [vmem:[%s4 + $0xa8] sm:$0xff] %vm609, %v908
    %947 = vst [vmem:[%s4 + $0xb0] sm:$0xff] %v781
    %948 = vst.msk [vmem:[%s4 + $0xb8] sm:$0xff] %vm609, %v911
    %949 = vst [vmem:[%s4 + $0xc0] sm:$0xff] %v784
    %950 = vst.msk [vmem:[%s4 + $0xc8] sm:$0xff] %vm609, %v914
    %951 = vst [vmem:[%s4 + $0xd0] sm:$0xff] %v787
    %952 = vst.msk [vmem:[%s4 + $0xd8] sm:$0xff] %vm609, %v917
    %953 = vst [vmem:[%s4 + $0xe0] sm:$0xff] %v790
    %954 = vst.msk [vmem:[%s4 + $0xe8] sm:$0xff] %vm609, %v920
    %955 = vst [vmem:[%s4 + $0xf0] sm:$0xff] %v793
    %956 = vst.msk [vmem:[%s4 + $0xf8] sm:$0xff] %vm609, %v923
    // Predicated region
    $region26: #{tpu_custom_call.1} parent=1 // pred_check
      _
    $region27: #{tpu_custom_call.1} parent=1 // pred_check_branch
      %958 = sbr.rel (0) target = $region29
    $region28: #{tpu_custom_call.1} parent=1 // pred_region
      _
    $region29: #{tpu_custom_call.1} parent=1 // pred_fallthru
      _
    // Predicated region
    $region30: #{tpu_custom_call.1} parent=1 // pred_check
      _
    $region31: #{tpu_custom_call.1} parent=1 // pred_check_branch
      %960 = sbr.rel (0) target = $region33
    $region32: #{tpu_custom_call.1} parent=1 // pred_region
      _
    $region33: #{tpu_custom_call.1} parent=1 // pred_fallthru
      _
    %961 = vsyncpa [#allocation3], 1
    %962 = vsyncpa [#allocation5], 1

</llo_original>
